<compile_context>
chip_gen: v7x
topology: tpu7x:2x2x1
jax: 0.10.0
libtpu: 0.0.40
codegen_flags: <defaults>
</compile_context>

<pallas_src>
from functools import partial

import numpy as np
import jax
import jax.numpy as jnp
from jax.experimental import pallas as pl
from jax.experimental.pallas import tpu as pltpu

PAD = 128                      # lane-padded width for obs / hidden / logits
N_LAYERS = 5
HIDDEN = (32, 64, 64, 32)      # fixed hidden widths of ClassicalControlRNN
W_ROWS = N_LAYERS * PAD        # 640 rows of packed (128,128) weight blocks
B_ROWS = 8                     # bias rows padded to one full sublane group
TB_MAX = 2048                  # max batch-tile rows (VMEM use ~3.5 MiB at 2048)


def _round_up(n, m):
    return ((n + m - 1) // m) * m


def _mlp_logsoftmax_kernel(x_ref, w_ref, b_ref, out_ref, xpad_ref, *, n_in, n_out):
    """x_ref: (TB, n_in) f32 obs; w_ref: (640, 128) bf16 weights;
    b_ref: (8, 128) f32 biases; out_ref: (TB, 128) f32 log-probs (padded lanes=-inf);
    xpad_ref: (TB, 128) f32 VMEM scratch."""
    # Zero-extend the observation tile to 128 lanes inside VMEM (no HBM lane pad).
    # Re-zeroed every step so it is correct under megacore grid sharding.
    xpad_ref[...] = jnp.zeros_like(xpad_ref)
    xpad_ref[:, :n_in] = x_ref[...]
    h = xpad_ref[...]                                   # (TB, 128) f32

    for i in range(N_LAYERS):
        w = w_ref[i * PAD:(i + 1) * PAD, :]             # (128, 128) bf16, zero-padded
        b = b_ref[i:i + 1, :]                           # (1, 128) f32
        h = jnp.dot(h.astype(jnp.bfloat16), w,
                    preferred_element_type=jnp.float32) + b
        if i < N_LAYERS - 1:
            h = jnp.maximum(h, 0.0)                     # padded cols stay exactly 0

    # LogSoftmax over the real n_out columns only (padded columns -> -inf).
    col = jax.lax.broadcasted_iota(jnp.int32, h.shape, dimension=1)
    logits = jnp.where(col < n_out, h, -jnp.inf)
    m = jnp.max(logits, axis=-1, keepdims=True)         # finite: n_out >= 1
    z = logits - m
    lse = jnp.log(jnp.sum(jnp.exp(z), axis=-1, keepdims=True))
    out_ref[...] = (z - lse).astype(out_ref.dtype)      # full-width, lane-dense store


def classical_control_rnn_forward(x, w_slab, b_slab, *, n_out):
    """x: [B, n_in] f32 observations; w_slab: (640,128) bf16; b_slab: (8,128) f32."""
    B, n_in = x.shape
    assert 1 <= n_out <= PAD and 1 <= n_in <= PAD
    assert w_slab.shape == (W_ROWS, PAD) and w_slab.dtype == jnp.bfloat16
    assert b_slab.shape == (B_ROWS, PAD) and b_slab.dtype == jnp.float32

    # Batch tiling: one fat tile for small batches; for large batches keep the
    # tile count even so both v7x TensorCores are fed under "parallel" semantics.
    Bp8 = _round_up(B, 8)
    if Bp8 <= TB_MAX:
        TB = Bp8
    else:
        n_tiles = -(-Bp8 // TB_MAX)
        if n_tiles % 2:
            n_tiles += 1
        TB = _round_up(-(-Bp8 // n_tiles), 8)
    Bp = _round_up(B, TB)

    # Only the batch axis is padded host-side (n_in columns -> negligible bytes).
    xp = jnp.pad(x, ((0, Bp - B), (0, 0))) if Bp != B else x

    out = pl.pallas_call(
        partial(_mlp_logsoftmax_kernel, n_in=n_in, n_out=n_out),
        out_shape=jax.ShapeDtypeStruct((Bp, PAD), jnp.float32),
        grid=(Bp // TB,),
        in_specs=[
            pl.BlockSpec((TB, n_in), lambda i: (i, 0)),        # batch tile (raw width)
            pl.BlockSpec((W_ROWS, PAD), lambda i: (0, 0)),     # bf16 weights, VMEM-resident
            pl.BlockSpec((B_ROWS, PAD), lambda i: (0, 0)),     # f32 biases, VMEM-resident
        ],
        out_specs=pl.BlockSpec((TB, PAD), lambda i: (i, 0)),   # lane-dense output
        scratch_shapes=[pltpu.VMEM((TB, PAD), jnp.float32)],   # in-VMEM lane pad of x
        compiler_params=pltpu.CompilerParams(
            dimension_semantics=("parallel",)),                # megacore over batch tiles
    )(xp, w_slab, b_slab)
    return out[:B, :n_out]


# --------------------------- parameter handling ---------------------------

def _layer_dims(n_in, n_out):
    widths = (n_in,) + HIDDEN + (n_out,)
    return list(zip(widths[:-1], widths[1:]))


def init_params(key, n_in, n_out):
    """Xavier-normal weights (gain=1, matching _initialize_weights for nn.Linear),
    PyTorch-default uniform bias init.  Stored as W[in, out], b[1, out] in f32."""
    params = {}
    for i, (fan_in, fan_out) in enumerate(_layer_dims(n_in, n_out), start=1):
        key, kw, kb = jax.random.split(key, 3)
        std = (2.0 / (fan_in + fan_out)) ** 0.5
        params[f"w{i}"] = std * jax.random.normal(kw, (fan_in, fan_out), jnp.float32)
        bound = 1.0 / (fan_in ** 0.5)
        params[f"b{i}"] = jax.random.uniform(kb, (1, fan_out), jnp.float32,
                                             minval=-bound, maxval=bound)
    return params


def pack_params(params, n_in, n_out):
    """Pack w1..w5 into a zero-padded bf16 (640,128) slab and b1..b5 into a
    zero-padded f32 (8,128) slab.  Padded entries MUST be zero (matmul/ReLU
    correctness through the padded hidden lanes relies on it)."""
    w = np.zeros((W_ROWS, PAD), np.float32)
    b = np.zeros((B_ROWS, PAD), np.float32)
    for i, (fan_in, fan_out) in enumerate(_layer_dims(n_in, n_out)):
        w[i * PAD:i * PAD + fan_in, :fan_out] = np.asarray(params[f"w{i + 1}"])
        b[i, :fan_out] = np.asarray(params[f"b{i + 1}"]).reshape(-1)
    return jnp.asarray(w, jnp.bfloat16), jnp.asarray(b, jnp.float32)


def _reference_forward(x, p, *, bf16_matmul):
    h = x
    for i in range(1, N_LAYERS + 1):
        w = p[f"w{i}"]
        if bf16_matmul:
            hm = jnp.dot(h.astype(jnp.bfloat16), w.astype(jnp.bfloat16),
                         preferred_element_type=jnp.float32)
        else:
            hm = h @ w
        h = hm + p[f"b{i}"]
        if i < N_LAYERS:
            h = jnp.maximum(h, 0.0)
    return jax.nn.log_softmax(h, axis=1)


if __name__ == "__main__":
    # CartPole-like sizes: obs dim 4, 2 discrete actions; batch of 256
    # vectorized environments -> a single 256-row batch tile.
    n_in, n_out = 4, 2
    B = 256

    key = jax.random.PRNGKey(0)
    key, kx = jax.random.split(key)
    x = jax.random.normal(kx, (B, n_in), jnp.float32)

    params = init_params(key, n_in, n_out)
    w_slab, b_slab = pack_params(params, n_in, n_out)

    out = classical_control_rnn_forward(x, w_slab, b_slab, n_out=n_out)
    out = jax.block_until_ready(out)
    assert out.shape == (B, n_out)

    # Tight check vs. a bf16-matmul-matched pure-JAX reference.
    ref_bf16 = _reference_forward(x, params, bf16_matmul=True)
    assert jnp.allclose(out, ref_bf16, atol=2e-3, rtol=2e-3), \
        "mismatch vs bf16-matched reference"

    # Loose sanity check vs. the original full-f32 module semantics.
    ref_f32 = _reference_forward(x, params, bf16_matmul=False)
    assert jnp.allclose(out, ref_f32, atol=1e-1, rtol=0.0), \
        "mismatch vs f32 reference"

    print("KERNEL_OK")
</pallas_src>

<mosaic_0001>
module attributes {stable_mosaic.version = 11 : i64} {
  func.func @_mlp_logsoftmax_kernel(%arg0: i32, %arg1: memref<256x4xf32, #tpu.memory_space<vmem>>, %arg2: memref<640x128xbf16, #tpu.memory_space<vmem>>, %arg3: memref<8x128xf32, #tpu.memory_space<vmem>>, %arg4: memref<256x128xf32, #tpu.memory_space<vmem>>, %arg5: memref<256x128xf32, #tpu.memory_space<vmem>>) attributes {dimension_semantics = [#tpu.dimension_semantics<parallel>], iteration_bounds = array<i64: 1>, scalar_prefetch = 0 : i64, scratch_operands = 1 : i64, tpu.core_type = #tpu.core_type<tc>, window_params = [{transform_indices = @transform_0, window_bounds = array<i64: 256, 4>}, {pipeline_mode = #tpu.pipeline_mode<synchronous>, transform_indices = @transform_1, window_bounds = array<i64: 640, 128>}, {pipeline_mode = #tpu.pipeline_mode<synchronous>, transform_indices = @transform_2, window_bounds = array<i64: 8, 128>}, {transform_indices = @transform_3, window_bounds = array<i64: 256, 128>}]} {
    %cst = arith.constant 0.000000e+00 : f32
    %0 = vector.broadcast %cst : f32 to vector<256x128xf32>
    %c0 = arith.constant 0 : index
    %c0_0 = arith.constant 0 : index
    %1 = vector.load %arg5[%c0, %c0_0] : memref<256x128xf32, #tpu.memory_space<vmem>>, vector<256x128xf32>
    tpu.vector_store %arg5[%c0, %c0_0], %0 {strides = array<i32>} : memref<256x128xf32, #tpu.memory_space<vmem>>, vector<256x128xf32>,
    %c0_1 = arith.constant 0 : index
    %c0_2 = arith.constant 0 : index
    %2 = vector.load %arg1[%c0_1, %c0_2] : memref<256x4xf32, #tpu.memory_space<vmem>>, vector<256x4xf32>
    %c0_3 = arith.constant 0 : index
    %c0_4 = arith.constant 0 : index
    %3 = vector.load %arg5[%c0_3, %c0_4] : memref<256x128xf32, #tpu.memory_space<vmem>>, vector<256x4xf32>
    tpu.vector_store %arg5[%c0_3, %c0_4], %2 {strides = array<i32>} : memref<256x128xf32, #tpu.memory_space<vmem>>, vector<256x4xf32>,
    %c0_5 = arith.constant 0 : index
    %c0_6 = arith.constant 0 : index
    %4 = vector.load %arg5[%c0_5, %c0_6] : memref<256x128xf32, #tpu.memory_space<vmem>>, vector<256x128xf32>
    %c0_7 = arith.constant 0 : index
    %c0_8 = arith.constant 0 : index
    %5 = vector.load %arg2[%c0_7, %c0_8] : memref<640x128xbf16, #tpu.memory_space<vmem>>, vector<128x128xbf16>
    %c0_9 = arith.constant 0 : index
    %c0_10 = arith.constant 0 : index
    %6 = vector.load %arg3[%c0_9, %c0_10] : memref<8x128xf32, #tpu.memory_space<vmem>>, vector<1x128xf32>
    %7 = arith.truncf %4 : vector<256x128xf32> to vector<256x128xbf16>
    %cst_11 = arith.constant dense<0.000000e+00> : vector<256x128xf32>
    %8 = tpu.matmul %7, %5, %cst_11 {dimension_numbers = #tpu.dot_dimension_numbers<[1], [0], [0], [1], [0, 0, 1, 1], [], []>} : vector<256x128xbf16>, vector<128x128xbf16>, vector<256x128xf32> -> vector<256x128xf32>
    %9 = vector.broadcast %6 : vector<1x128xf32> to vector<256x128xf32>
    %10 = arith.addf %8, %9 : vector<256x128xf32>
    %cst_12 = arith.constant 0.000000e+00 : f32
    %11 = vector.broadcast %cst_12 : f32 to vector<256x128xf32>
    %12 = arith.maximumf %10, %11 : vector<256x128xf32>
    %c128 = arith.constant 128 : index
    %c0_13 = arith.constant 0 : index
    %13 = vector.load %arg2[%c128, %c0_13] : memref<640x128xbf16, #tpu.memory_space<vmem>>, vector<128x128xbf16>
    %c1 = arith.constant 1 : index
    %c0_14 = arith.constant 0 : index
    %14 = vector.load %arg3[%c1, %c0_14] : memref<8x128xf32, #tpu.memory_space<vmem>>, vector<1x128xf32>
    %15 = arith.truncf %12 : vector<256x128xf32> to vector<256x128xbf16>
    %cst_15 = arith.constant dense<0.000000e+00> : vector<256x128xf32>
    %16 = tpu.matmul %15, %13, %cst_15 {dimension_numbers = #tpu.dot_dimension_numbers<[1], [0], [0], [1], [0, 0, 1, 1], [], []>} : vector<256x128xbf16>, vector<128x128xbf16>, vector<256x128xf32> -> vector<256x128xf32>
    %17 = vector.broadcast %14 : vector<1x128xf32> to vector<256x128xf32>
    %18 = arith.addf %16, %17 : vector<256x128xf32>
    %cst_16 = arith.constant 0.000000e+00 : f32
    %19 = vector.broadcast %cst_16 : f32 to vector<256x128xf32>
    %20 = arith.maximumf %18, %19 : vector<256x128xf32>
    %c256 = arith.constant 256 : index
    %c0_17 = arith.constant 0 : index
    %21 = vector.load %arg2[%c256, %c0_17] : memref<640x128xbf16, #tpu.memory_space<vmem>>, vector<128x128xbf16>
    %c2 = arith.constant 2 : index
    %c0_18 = arith.constant 0 : index
    %22 = vector.load %arg3[%c2, %c0_18] : memref<8x128xf32, #tpu.memory_space<vmem>>, vector<1x128xf32>
    %23 = arith.truncf %20 : vector<256x128xf32> to vector<256x128xbf16>
    %cst_19 = arith.constant dense<0.000000e+00> : vector<256x128xf32>
    %24 = tpu.matmul %23, %21, %cst_19 {dimension_numbers = #tpu.dot_dimension_numbers<[1], [0], [0], [1], [0, 0, 1, 1], [], []>} : vector<256x128xbf16>, vector<128x128xbf16>, vector<256x128xf32> -> vector<256x128xf32>
    %25 = vector.broadcast %22 : vector<1x128xf32> to vector<256x128xf32>
    %26 = arith.addf %24, %25 : vector<256x128xf32>
    %cst_20 = arith.constant 0.000000e+00 : f32
    %27 = vector.broadcast %cst_20 : f32 to vector<256x128xf32>
    %28 = arith.maximumf %26, %27 : vector<256x128xf32>
    %c384 = arith.constant 384 : index
    %c0_21 = arith.constant 0 : index
    %29 = vector.load %arg2[%c384, %c0_21] : memref<640x128xbf16, #tpu.memory_space<vmem>>, vector<128x128xbf16>
    %c3 = arith.constant 3 : index
    %c0_22 = arith.constant 0 : index
    %30 = vector.load %arg3[%c3, %c0_22] : memref<8x128xf32, #tpu.memory_space<vmem>>, vector<1x128xf32>
    %31 = arith.truncf %28 : vector<256x128xf32> to vector<256x128xbf16>
    %cst_23 = arith.constant dense<0.000000e+00> : vector<256x128xf32>
    %32 = tpu.matmul %31, %29, %cst_23 {dimension_numbers = #tpu.dot_dimension_numbers<[1], [0], [0], [1], [0, 0, 1, 1], [], []>} : vector<256x128xbf16>, vector<128x128xbf16>, vector<256x128xf32> -> vector<256x128xf32>
    %33 = vector.broadcast %30 : vector<1x128xf32> to vector<256x128xf32>
    %34 = arith.addf %32, %33 : vector<256x128xf32>
    %cst_24 = arith.constant 0.000000e+00 : f32
    %35 = vector.broadcast %cst_24 : f32 to vector<256x128xf32>
    %36 = arith.maximumf %34, %35 : vector<256x128xf32>
    %c512 = arith.constant 512 : index
    %c0_25 = arith.constant 0 : index
    %37 = vector.load %arg2[%c512, %c0_25] : memref<640x128xbf16, #tpu.memory_space<vmem>>, vector<128x128xbf16>
    %c4 = arith.constant 4 : index
    %c0_26 = arith.constant 0 : index
    %38 = vector.load %arg3[%c4, %c0_26] : memref<8x128xf32, #tpu.memory_space<vmem>>, vector<1x128xf32>
    %39 = arith.truncf %36 : vector<256x128xf32> to vector<256x128xbf16>
    %cst_27 = arith.constant dense<0.000000e+00> : vector<256x128xf32>
    %40 = tpu.matmul %39, %37, %cst_27 {dimension_numbers = #tpu.dot_dimension_numbers<[1], [0], [0], [1], [0, 0, 1, 1], [], []>} : vector<256x128xbf16>, vector<128x128xbf16>, vector<256x128xf32> -> vector<256x128xf32>
    %41 = vector.broadcast %38 : vector<1x128xf32> to vector<256x128xf32>
    %42 = arith.addf %40, %41 : vector<256x128xf32>
    %43 = tpu.iota {dimensions = array<i32: 1>} : vector<256x128xi32>
    %c2_i32 = arith.constant 2 : i32
    %44 = vector.broadcast %c2_i32 : i32 to vector<256x128xi32>
    %45 = arith.cmpi slt, %43, %44 : vector<256x128xi32>
    %cst_28 = arith.constant 0xFF800000 : f32
    %46 = vector.broadcast %cst_28 : f32 to vector<256x128xf32>
    %47 = arith.select %45, %42, %46 : vector<256x128xi1>, vector<256x128xf32>
    %cst_29 = arith.constant dense<0xFF800000> : vector<256xf32>
    %48 = vector.multi_reduction <maximumf>, %47, %cst_29 [1] : vector<256x128xf32> to vector<256xf32>
    %49 = vector.shape_cast %48 : vector<256xf32> to vector<256x1xf32>
    %50 = vector.broadcast %49 : vector<256x1xf32> to vector<256x128xf32>
    %51 = arith.subf %47, %50 : vector<256x128xf32>
    %52 = math.exp %51 : vector<256x128xf32>
    %cst_30 = arith.constant dense<0.000000e+00> : vector<256xf32>
    %53 = vector.multi_reduction <add>, %52, %cst_30 [1] : vector<256x128xf32> to vector<256xf32>
    %54 = vector.shape_cast %53 : vector<256xf32> to vector<256x1xf32>
    %55 = math.log %54 : vector<256x1xf32>
    %56 = vector.broadcast %55 : vector<256x1xf32> to vector<256x128xf32>
    %57 = arith.subf %51, %56 : vector<256x128xf32>
    %c0_31 = arith.constant 0 : index
    %c0_32 = arith.constant 0 : index
    %58 = vector.load %arg4[%c0_31, %c0_32] : memref<256x128xf32, #tpu.memory_space<vmem>>, vector<256x128xf32>
    tpu.vector_store %arg4[%c0_31, %c0_32], %57 {strides = array<i32>} : memref<256x128xf32, #tpu.memory_space<vmem>>, vector<256x128xf32>,
    return
  }
  func.func @transform_0(%arg0: i32) -> (i32, i32) {
    %c0_i32 = arith.constant 0 : i32
    %c0_i32_0 = arith.constant 0 : i32
    return %arg0, %c0_i32 : i32, i32
  }
  func.func @transform_1(%arg0: i32) -> (i32, i32) {
    %c0_i32 = arith.constant 0 : i32
    %c0_i32_0 = arith.constant 0 : i32
    %c0_i32_1 = arith.constant 0 : i32
    return %c0_i32, %c0_i32_0 : i32, i32
  }
  func.func @transform_2(%arg0: i32) -> (i32, i32) {
    %c0_i32 = arith.constant 0 : i32
    %c0_i32_0 = arith.constant 0 : i32
    %c0_i32_1 = arith.constant 0 : i32
    return %c0_i32, %c0_i32_0 : i32, i32
  }
  func.func @transform_3(%arg0: i32) -> (i32, i32) {
    %c0_i32 = arith.constant 0 : i32
    %c0_i32_0 = arith.constant 0 : i32
    return %arg0, %c0_i32 : i32, i32
  }
}

</mosaic_0001>

<llo_original>
// kernel: tpu_custom_call.1
$region0: #{tpu_custom_call.1}
  #allocation0 [shape = 'u32[]', space=smem, size = 0x4, offset = 0x4, fixed_abs, tag = 'smem constant byte address 0x4 - core index']
  #allocation1 [shape = 'u32[144,128]{1,0:T(1,128)}', space=vmem, size = 0x12000, scoped, tag = 'internal scratch']
  #allocation2 [shape = 'f32[256,128]{1,0:T(8,128)}', space=vmem, size = 0x20000, scoped, tag = 'scratch operand']
  %s0 = inlined_call_operand.vmem [shape: f32[256,4], index: 0, kind: input, shape index: {}]
  %s1 = inlined_call_operand.hbm [shape: bf16[640,128], index: 1, kind: input, shape index: {}]
  %s2 = inlined_call_operand.vmem [shape: f32[8,128], index: 2, kind: input, shape index: {}]
  %s3 = inlined_call_operand.hbm [shape: f32[256,128], index: 3, kind: output, shape index: {}]
  %s4 = sld [smem:[#allocation0]]
  $region26: #{tpu_custom_call.1} parent=0
    _
  %s6 = ssub.s32 1, %s4
  %s7 = scalar_select 0, %s6, %s4
  $region1: #{tpu_custom_call.1} parent=0
    #allocation3 [shape = 'u8[163840]{0}', space=vmem, size = 0x28000, scoped, tag = 'input window, operand 1, single buffered']
    #allocation4 [shape = 's32[1]{0}', space=sflag, size = 0x4, scoped, tag = 'scoped memory for tpu_custom_call.1']
    #allocation5 [shape = 's32[1]{0}', space=sflag, size = 0x4, scoped, tag = 'scoped memory for tpu_custom_call.1']
    #allocation6 [shape = 'u8[131072]{0}', space=vmem, size = 0x20000, scoped, tag = 'output window, operand 0, single buffered']
    %8 = vsyncpa [#allocation4], 0
    %9 = vsyncpa [#allocation5], 0
    // Predicated region
    $region2: #{tpu_custom_call.1} parent=1 // pred_check
      _
    $region3: #{tpu_custom_call.1} parent=1 // pred_check_branch
      %11 = sbr.rel (0) target = $region5
    $region4: #{tpu_custom_call.1} parent=1 // pred_region
      _
    $region5: #{tpu_custom_call.1} parent=1 // pred_fallthru
      _
    // Predicated region
    $region6: #{tpu_custom_call.1} parent=1 // pred_check
      _
    $region7: #{tpu_custom_call.1} parent=1 // pred_check_branch
      %13 = sbr.rel (0) target = $region9
    $region8: #{tpu_custom_call.1} parent=1 // pred_region
      %s15 = ssub.s32 5120, 5120
      %16 = vsyncadd [#allocation4], %s15
      %s17 = sshll.u32 [#allocation3], 4
      %s18 = int_to_ptr.vmem [resolvable:$true] %s17
      %23 = dma.hbm_to_vmem [thread:$0]  %s1, 5120, %s18, [#allocation4], 64, 64, 4
    $region9: #{tpu_custom_call.1} parent=1 // pred_fallthru
      _
    // Predicated region
    $region10: #{tpu_custom_call.1} parent=1 // pred_check
      _
    $region11: #{tpu_custom_call.1} parent=1 // pred_check_branch
      %25 = sbr.rel (0) target = $region13
    $region12: #{tpu_custom_call.1} parent=1 // pred_region
      _
    $region13: #{tpu_custom_call.1} parent=1 // pred_fallthru
      _
    // Predicated region
    $region14: #{tpu_custom_call.1} parent=1 // pred_check
      _
    $region15: #{tpu_custom_call.1} parent=1 // pred_check_branch
      %27 = sbr.rel (0) target = $region17
    $region16: #{tpu_custom_call.1} parent=1 // pred_region
      %28 = dma.done [#allocation4], 5120
    $region17: #{tpu_custom_call.1} parent=1 // pred_fallthru
      _
    %30 = vst [vmem:[#allocation2] sm:$0xff] 0.0
    %31 = vst [vmem:[#allocation2 + $0x8] sm:$0xff] 0.0
    %32 = vst [vmem:[#allocation2 + $0x10] sm:$0xff] 0.0
    %33 = vst [vmem:[#allocation2 + $0x18] sm:$0xff] 0.0
    %34 = vst [vmem:[#allocation2 + $0x20] sm:$0xff] 0.0
    %35 = vst [vmem:[#allocation2 + $0x28] sm:$0xff] 0.0
    %36 = vst [vmem:[#allocation2 + $0x30] sm:$0xff] 0.0
    %37 = vst [vmem:[#allocation2 + $0x38] sm:$0xff] 0.0
    %38 = vst [vmem:[#allocation2 + $0x40] sm:$0xff] 0.0
    %39 = vst [vmem:[#allocation2 + $0x48] sm:$0xff] 0.0
    %40 = vst [vmem:[#allocation2 + $0x50] sm:$0xff] 0.0
    %41 = vst [vmem:[#allocation2 + $0x58] sm:$0xff] 0.0
    %42 = vst [vmem:[#allocation2 + $0x60] sm:$0xff] 0.0
    %43 = vst [vmem:[#allocation2 + $0x68] sm:$0xff] 0.0
    %44 = vst [vmem:[#allocation2 + $0x70] sm:$0xff] 0.0
    %45 = vst [vmem:[#allocation2 + $0x78] sm:$0xff] 0.0
    %46 = vst [vmem:[#allocation2 + $0x80] sm:$0xff] 0.0
    %47 = vst [vmem:[#allocation2 + $0x88] sm:$0xff] 0.0
    %48 = vst [vmem:[#allocation2 + $0x90] sm:$0xff] 0.0
    %49 = vst [vmem:[#allocation2 + $0x98] sm:$0xff] 0.0
    %50 = vst [vmem:[#allocation2 + $0xa0] sm:$0xff] 0.0
    %51 = vst [vmem:[#allocation2 + $0xa8] sm:$0xff] 0.0
    %52 = vst [vmem:[#allocation2 + $0xb0] sm:$0xff] 0.0
    %53 = vst [vmem:[#allocation2 + $0xb8] sm:$0xff] 0.0
    %54 = vst [vmem:[#allocation2 + $0xc0] sm:$0xff] 0.0
    %55 = vst [vmem:[#allocation2 + $0xc8] sm:$0xff] 0.0
    %56 = vst [vmem:[#allocation2 + $0xd0] sm:$0xff] 0.0
    %57 = vst [vmem:[#allocation2 + $0xd8] sm:$0xff] 0.0
    %58 = vst [vmem:[#allocation2 + $0xe0] sm:$0xff] 0.0
    %59 = vst [vmem:[#allocation2 + $0xe8] sm:$0xff] 0.0
    %60 = vst [vmem:[#allocation2 + $0xf0] sm:$0xff] 0.0
    %61 = vst [vmem:[#allocation2 + $0xf8] sm:$0xff] 0.0
    %v62 = vld [vmem:[%s0] sm:$0xff]
    %v63 = vld [vmem:[%s0 + $0x8] sm:$0xff]
    %v64 = vld [vmem:[%s0 + $0x10] sm:$0xff]
    %v65 = vld [vmem:[%s0 + $0x18] sm:$0xff]
    %v66 = vld [vmem:[%s0 + $0x20] sm:$0xff]
    %v67 = vld [vmem:[%s0 + $0x28] sm:$0xff]
    %v68 = vld [vmem:[%s0 + $0x30] sm:$0xff]
    %v69 = vld [vmem:[%s0 + $0x38] sm:$0xff]
    %v70 = vld [vmem:[%s0 + $0x40] sm:$0xff]
    %v71 = vld [vmem:[%s0 + $0x48] sm:$0xff]
    %v72 = vld [vmem:[%s0 + $0x50] sm:$0xff]
    %v73 = vld [vmem:[%s0 + $0x58] sm:$0xff]
    %v74 = vld [vmem:[%s0 + $0x60] sm:$0xff]
    %v75 = vld [vmem:[%s0 + $0x68] sm:$0xff]
    %v76 = vld [vmem:[%s0 + $0x70] sm:$0xff]
    %v77 = vld [vmem:[%s0 + $0x78] sm:$0xff]
    %v78 = vld [vmem:[%s0 + $0x80] sm:$0xff]
    %v79 = vld [vmem:[%s0 + $0x88] sm:$0xff]
    %v80 = vld [vmem:[%s0 + $0x90] sm:$0xff]
    %v81 = vld [vmem:[%s0 + $0x98] sm:$0xff]
    %v82 = vld [vmem:[%s0 + $0xa0] sm:$0xff]
    %v83 = vld [vmem:[%s0 + $0xa8] sm:$0xff]
    %v84 = vld [vmem:[%s0 + $0xb0] sm:$0xff]
    %v85 = vld [vmem:[%s0 + $0xb8] sm:$0xff]
    %v86 = vld [vmem:[%s0 + $0xc0] sm:$0xff]
    %v87 = vld [vmem:[%s0 + $0xc8] sm:$0xff]
    %v88 = vld [vmem:[%s0 + $0xd0] sm:$0xff]
    %v89 = vld [vmem:[%s0 + $0xd8] sm:$0xff]
    %v90 = vld [vmem:[%s0 + $0xe0] sm:$0xff]
    %v91 = vld [vmem:[%s0 + $0xe8] sm:$0xff]
    %v92 = vld [vmem:[%s0 + $0xf0] sm:$0xff]
    %v93 = vld [vmem:[%s0 + $0xf8] sm:$0xff]
    %vm94 = vcmask 31744
    %95 = vst.msk [vmem:[#allocation2] sm:$0xff] %vm94, %v62
    %96 = vst.msk [vmem:[#allocation2 + $0x8] sm:$0xff] %vm94, %v63
    %97 = vst.msk [vmem:[#allocation2 + $0x10] sm:$0xff] %vm94, %v64
    %98 = vst.msk [vmem:[#allocation2 + $0x18] sm:$0xff] %vm94, %v65
    %99 = vst.msk [vmem:[#allocation2 + $0x20] sm:$0xff] %vm94, %v66
    %100 = vst.msk [vmem:[#allocation2 + $0x28] sm:$0xff] %vm94, %v67
    %101 = vst.msk [vmem:[#allocation2 + $0x30] sm:$0xff] %vm94, %v68
    %102 = vst.msk [vmem:[#allocation2 + $0x38] sm:$0xff] %vm94, %v69
    %103 = vst.msk [vmem:[#allocation2 + $0x40] sm:$0xff] %vm94, %v70
    %104 = vst.msk [vmem:[#allocation2 + $0x48] sm:$0xff] %vm94, %v71
    %105 = vst.msk [vmem:[#allocation2 + $0x50] sm:$0xff] %vm94, %v72
    %106 = vst.msk [vmem:[#allocation2 + $0x58] sm:$0xff] %vm94, %v73
    %107 = vst.msk [vmem:[#allocation2 + $0x60] sm:$0xff] %vm94, %v74
    %108 = vst.msk [vmem:[#allocation2 + $0x68] sm:$0xff] %vm94, %v75
    %109 = vst.msk [vmem:[#allocation2 + $0x70] sm:$0xff] %vm94, %v76
    %110 = vst.msk [vmem:[#allocation2 + $0x78] sm:$0xff] %vm94, %v77
    %111 = vst.msk [vmem:[#allocation2 + $0x80] sm:$0xff] %vm94, %v78
    %112 = vst.msk [vmem:[#allocation2 + $0x88] sm:$0xff] %vm94, %v79
    %113 = vst.msk [vmem:[#allocation2 + $0x90] sm:$0xff] %vm94, %v80
    %114 = vst.msk [vmem:[#allocation2 + $0x98] sm:$0xff] %vm94, %v81
    %115 = vst.msk [vmem:[#allocation2 + $0xa0] sm:$0xff] %vm94, %v82
    %116 = vst.msk [vmem:[#allocation2 + $0xa8] sm:$0xff] %vm94, %v83
    %117 = vst.msk [vmem:[#allocation2 + $0xb0] sm:$0xff] %vm94, %v84
    %118 = vst.msk [vmem:[#allocation2 + $0xb8] sm:$0xff] %vm94, %v85
    %119 = vst.msk [vmem:[#allocation2 + $0xc0] sm:$0xff] %vm94, %v86
    %120 = vst.msk [vmem:[#allocation2 + $0xc8] sm:$0xff] %vm94, %v87
    %121 = vst.msk [vmem:[#allocation2 + $0xd0] sm:$0xff] %vm94, %v88
    %122 = vst.msk [vmem:[#allocation2 + $0xd8] sm:$0xff] %vm94, %v89
    %123 = vst.msk [vmem:[#allocation2 + $0xe0] sm:$0xff] %vm94, %v90
    %124 = vst.msk [vmem:[#allocation2 + $0xe8] sm:$0xff] %vm94, %v91
    %125 = vst.msk [vmem:[#allocation2 + $0xf0] sm:$0xff] %vm94, %v92
    %126 = vst.msk [vmem:[#allocation2 + $0xf8] sm:$0xff] %vm94, %v93
    %v127 = vld [vmem:[#allocation2] sm:$0xff]
    %v128 = vld [vmem:[#allocation2 + $0x8] sm:$0xff]
    %v129 = vld [vmem:[#allocation2 + $0x10] sm:$0xff]
    %v130 = vld [vmem:[#allocation2 + $0x18] sm:$0xff]
    %v131 = vld [vmem:[#allocation2 + $0x20] sm:$0xff]
    %v132 = vld [vmem:[#allocation2 + $0x28] sm:$0xff]
    %v133 = vld [vmem:[#allocation2 + $0x30] sm:$0xff]
    %v134 = vld [vmem:[#allocation2 + $0x38] sm:$0xff]
    %v135 = vld [vmem:[#allocation2 + $0x40] sm:$0xff]
    %v136 = vld [vmem:[#allocation2 + $0x48] sm:$0xff]
    %v137 = vld [vmem:[#allocation2 + $0x50] sm:$0xff]
    %v138 = vld [vmem:[#allocation2 + $0x58] sm:$0xff]
    %v139 = vld [vmem:[#allocation2 + $0x60] sm:$0xff]
    %v140 = vld [vmem:[#allocation2 + $0x68] sm:$0xff]
    %v141 = vld [vmem:[#allocation2 + $0x70] sm:$0xff]
    %v142 = vld [vmem:[#allocation2 + $0x78] sm:$0xff]
    %v143 = vld [vmem:[#allocation2 + $0x80] sm:$0xff]
    %v144 = vld [vmem:[#allocation2 + $0x88] sm:$0xff]
    %v145 = vld [vmem:[#allocation2 + $0x90] sm:$0xff]
    %v146 = vld [vmem:[#allocation2 + $0x98] sm:$0xff]
    %v147 = vld [vmem:[#allocation2 + $0xa0] sm:$0xff]
    %v148 = vld [vmem:[#allocation2 + $0xa8] sm:$0xff]
    %v149 = vld [vmem:[#allocation2 + $0xb0] sm:$0xff]
    %v150 = vld [vmem:[#allocation2 + $0xb8] sm:$0xff]
    %v151 = vld [vmem:[#allocation2 + $0xc0] sm:$0xff]
    %v152 = vld [vmem:[#allocation2 + $0xc8] sm:$0xff]
    %v153 = vld [vmem:[#allocation2 + $0xd0] sm:$0xff]
    %v154 = vld [vmem:[#allocation2 + $0xd8] sm:$0xff]
    %v155 = vld [vmem:[#allocation2 + $0xe0] sm:$0xff]
    %v156 = vld [vmem:[#allocation2 + $0xe8] sm:$0xff]
    %v157 = vld [vmem:[#allocation2 + $0xf0] sm:$0xff]
    %v158 = vld [vmem:[#allocation2 + $0xf8] sm:$0xff]
    %v159 = vld [vmem:[#allocation3] sm:$0xf]
    %v160 = vld [vmem:[#allocation3 + $0x4] sm:$0xf]
    %v161 = vld [vmem:[#allocation3 + $0x8] sm:$0xf]
    %v162 = vld [vmem:[#allocation3 + $0xc] sm:$0xf]
    %v163 = vld [vmem:[#allocation3 + $0x10] sm:$0xf]
    %v164 = vld [vmem:[#allocation3 + $0x14] sm:$0xf]
    %v165 = vld [vmem:[#allocation3 + $0x18] sm:$0xf]
    %v166 = vld [vmem:[#allocation3 + $0x1c] sm:$0xf]
    %v167 = vld [vmem:[#allocation3 + $0x20] sm:$0xf]
    %v168 = vld [vmem:[#allocation3 + $0x24] sm:$0xf]
    %v169 = vld [vmem:[#allocation3 + $0x28] sm:$0xf]
    %v170 = vld [vmem:[#allocation3 + $0x2c] sm:$0xf]
    %v171 = vld [vmem:[#allocation3 + $0x30] sm:$0xf]
    %v172 = vld [vmem:[#allocation3 + $0x34] sm:$0xf]
    %v173 = vld [vmem:[#allocation3 + $0x38] sm:$0xf]
    %v174 = vld [vmem:[#allocation3 + $0x3c] sm:$0xf]
    %v175 = vld [vmem:[%s2] sm:$0x1]
    %v176 = vpack.c.bf16 %v128, %v127
    %v177 = vpack.c.bf16 %v130, %v129
    %v178 = vpack.c.bf16 %v132, %v131
    %v179 = vpack.c.bf16 %v134, %v133
    %v180 = vpack.c.bf16 %v136, %v135
    %v181 = vpack.c.bf16 %v138, %v137
    %v182 = vpack.c.bf16 %v140, %v139
    %v183 = vpack.c.bf16 %v142, %v141
    %v184 = vpack.c.bf16 %v144, %v143
    %v185 = vpack.c.bf16 %v146, %v145
    %v186 = vpack.c.bf16 %v148, %v147
    %v187 = vpack.c.bf16 %v150, %v149
    %v188 = vpack.c.bf16 %v152, %v151
    %v189 = vpack.c.bf16 %v154, %v153
    %v190 = vpack.c.bf16 %v156, %v155
    %v191 = vpack.c.bf16 %v158, %v157
    %v192 = vlaneseq
    %v193 = vshrl.u32 %v192, 7
    %v194 = vsub.s32 0, %v193
    %v195 = vrot.slane %v175, %v194
    %v212 = vunpack.c.l.b16 %v159
    %v213 = vunpack.c.l.b16 %v160
    %v214 = vunpack.c.l.b16 %v161
    %v215 = vunpack.c.l.b16 %v162
    %v216 = vunpack.c.l.b16 %v163
    %v217 = vunpack.c.l.b16 %v164
    %v218 = vunpack.c.l.b16 %v165
    %v219 = vunpack.c.l.b16 %v166
    %v220 = vunpack.c.l.b16 %v167
    %v221 = vunpack.c.l.b16 %v168
    %v222 = vunpack.c.l.b16 %v169
    %v223 = vunpack.c.l.b16 %v170
    %v224 = vunpack.c.l.b16 %v171
    %v225 = vunpack.c.l.b16 %v172
    %v226 = vunpack.c.l.b16 %v173
    %v227 = vunpack.c.l.b16 %v174
    %v228 = vpack.c.b16 %v213, %v212
    %v229 = vpack.c.b16 %v215, %v214
    %v230 = vpack.c.b16 %v217, %v216
    %v231 = vpack.c.b16 %v219, %v218
    %v232 = vpack.c.b16 %v221, %v220
    %v233 = vpack.c.b16 %v223, %v222
    %v234 = vpack.c.b16 %v225, %v224
    %v235 = vpack.c.b16 %v227, %v226
    %244 = vmatprep.subr.bf16.mxu0 0
    %245 = vmatpush1.bf16.msra.mxu0 %v228
    %246 = vmatprep.subr.bf16.mxu0 0
    %247 = vmatpush1.bf16.msra.mxu0 %v229
    %248 = vmatprep.subr.bf16.mxu0 0
    %249 = vmatpush1.bf16.msra.mxu0 %v230
    %250 = vmatprep.subr.bf16.mxu0 0
    %251 = vmatpush1.bf16.msra.mxu0 %v231
    %252 = vmatprep.subr.bf16.mxu0 0
    %253 = vmatpush1.bf16.msra.mxu0 %v232
    %254 = vmatprep.subr.bf16.mxu0 0
    %255 = vmatpush1.bf16.msra.mxu0 %v233
    %256 = vmatprep.subr.bf16.mxu0 0
    %257 = vmatpush1.bf16.msra.mxu0 %v234
    %258 = vmatprep.subr.bf16.mxu0 0
    %259 = vmatpush1.bf16.msra.mxu0 %v235
    %260 = vmatprep.subr.bf16.mxu0 0
    %261 = vmatpush1.bf16.msra.mxu0 0
    %262 = vmatprep.subr.bf16.mxu0 0
    %263 = vmatpush1.bf16.msra.mxu0 0
    %264 = vmatprep.subr.bf16.mxu0 0
    %265 = vmatpush1.bf16.msra.mxu0 0
    %266 = vmatprep.subr.bf16.mxu0 0
    %267 = vmatpush1.bf16.msra.mxu0 0
    %268 = vmatprep.subr.bf16.mxu0 0
    %269 = vmatpush1.bf16.msra.mxu0 0
    %270 = vmatprep.subr.bf16.mxu0 0
    %271 = vmatpush1.bf16.msra.mxu0 0
    %272 = vmatprep.subr.bf16.mxu0 0
    %273 = vmatpush1.bf16.msra.mxu0 0
    %274 = vmatprep.subr.bf16.mxu0 0
    %275 = vmatpush1.bf16.msra.mxu0 0
    %276 = vmatprep.mubr.bf16.mxu0 0
    %277 = vmatmul.mubr.bf16.gmra.mrb[0].mxu0 %v176
    %v278 = vpop.f32.mrb[0].mxu0
    %v279 = vadd.f32 %v195, %v278
    %v280 = vpop.f32.mrb[0].mxu0
    %v281 = vpop.f32.mrb[0].mxu0
    %v282 = vadd.f32 %v195, %v281
    %v283 = vpop.f32.mrb[0].mxu0
    %284 = vmatprep.mubr.bf16.mxu0 0
    %285 = vmatmul.mubr.bf16.gmra.mrb[0].mxu0 %v177
    %v286 = vpop.f32.mrb[0].mxu0
    %v287 = vadd.f32 %v195, %v286
    %v288 = vpop.f32.mrb[0].mxu0
    %v289 = vpop.f32.mrb[0].mxu0
    %v290 = vadd.f32 %v195, %v289
    %v291 = vpop.f32.mrb[0].mxu0
    %292 = vmatprep.mubr.bf16.mxu0 0
    %293 = vmatmul.mubr.bf16.gmra.mrb[0].mxu0 %v178
    %v294 = vpop.f32.mrb[0].mxu0
    %v295 = vadd.f32 %v195, %v294
    %v296 = vpop.f32.mrb[0].mxu0
    %v297 = vpop.f32.mrb[0].mxu0
    %v298 = vadd.f32 %v195, %v297
    %v299 = vpop.f32.mrb[0].mxu0
    %300 = vmatprep.mubr.bf16.mxu0 0
    %301 = vmatmul.mubr.bf16.gmra.mrb[0].mxu0 %v179
    %v302 = vpop.f32.mrb[0].mxu0
    %v303 = vadd.f32 %v195, %v302
    %v304 = vpop.f32.mrb[0].mxu0
    %v305 = vpop.f32.mrb[0].mxu0
    %v306 = vadd.f32 %v195, %v305
    %v307 = vpop.f32.mrb[0].mxu0
    %308 = vmatprep.mubr.bf16.mxu0 0
    %309 = vmatmul.mubr.bf16.gmra.mrb[0].mxu0 %v180
    %v310 = vpop.f32.mrb[0].mxu0
    %v311 = vadd.f32 %v195, %v310
    %v312 = vpop.f32.mrb[0].mxu0
    %v313 = vpop.f32.mrb[0].mxu0
    %v314 = vadd.f32 %v195, %v313
    %v315 = vpop.f32.mrb[0].mxu0
    %316 = vmatprep.mubr.bf16.mxu0 0
    %317 = vmatmul.mubr.bf16.gmra.mrb[0].mxu0 %v181
    %v318 = vpop.f32.mrb[0].mxu0
    %v319 = vadd.f32 %v195, %v318
    %v320 = vpop.f32.mrb[0].mxu0
    %v321 = vpop.f32.mrb[0].mxu0
    %v322 = vadd.f32 %v195, %v321
    %v323 = vpop.f32.mrb[0].mxu0
    %324 = vmatprep.mubr.bf16.mxu0 0
    %325 = vmatmul.mubr.bf16.gmra.mrb[0].mxu0 %v182
    %v326 = vpop.f32.mrb[0].mxu0
    %v327 = vadd.f32 %v195, %v326
    %v328 = vpop.f32.mrb[0].mxu0
    %v329 = vpop.f32.mrb[0].mxu0
    %v330 = vadd.f32 %v195, %v329
    %v331 = vpop.f32.mrb[0].mxu0
    %332 = vmatprep.mubr.bf16.mxu0 0
    %333 = vmatmul.mubr.bf16.gmra.mrb[0].mxu0 %v183
    %v334 = vpop.f32.mrb[0].mxu0
    %v335 = vadd.f32 %v195, %v334
    %v336 = vpop.f32.mrb[0].mxu0
    %v337 = vpop.f32.mrb[0].mxu0
    %v338 = vadd.f32 %v195, %v337
    %v339 = vpop.f32.mrb[0].mxu0
    %340 = vmatprep.mubr.bf16.mxu0 0
    %341 = vmatmul.mubr.bf16.gmra.mrb[0].mxu0 %v184
    %v342 = vpop.f32.mrb[0].mxu0
    %v343 = vadd.f32 %v195, %v342
    %v344 = vpop.f32.mrb[0].mxu0
    %v345 = vpop.f32.mrb[0].mxu0
    %v346 = vadd.f32 %v195, %v345
    %v347 = vpop.f32.mrb[0].mxu0
    %348 = vmatprep.mubr.bf16.mxu0 0
    %349 = vmatmul.mubr.bf16.gmra.mrb[0].mxu0 %v185
    %v350 = vpop.f32.mrb[0].mxu0
    %v351 = vadd.f32 %v195, %v350
    %v352 = vpop.f32.mrb[0].mxu0
    %v353 = vpop.f32.mrb[0].mxu0
    %v354 = vadd.f32 %v195, %v353
    %v355 = vpop.f32.mrb[0].mxu0
    %356 = vmatprep.mubr.bf16.mxu0 0
    %357 = vmatmul.mubr.bf16.gmra.mrb[0].mxu0 %v186
    %v358 = vpop.f32.mrb[0].mxu0
    %v359 = vadd.f32 %v195, %v358
    %v360 = vpop.f32.mrb[0].mxu0
    %v361 = vpop.f32.mrb[0].mxu0
    %v362 = vadd.f32 %v195, %v361
    %v363 = vpop.f32.mrb[0].mxu0
    %364 = vmatprep.mubr.bf16.mxu0 0
    %365 = vmatmul.mubr.bf16.gmra.mrb[0].mxu0 %v187
    %v366 = vpop.f32.mrb[0].mxu0
    %v367 = vadd.f32 %v195, %v366
    %v368 = vpop.f32.mrb[0].mxu0
    %v369 = vpop.f32.mrb[0].mxu0
    %v370 = vadd.f32 %v195, %v369
    %v371 = vpop.f32.mrb[0].mxu0
    %372 = vmatprep.mubr.bf16.mxu0 0
    %373 = vmatmul.mubr.bf16.gmra.mrb[0].mxu0 %v188
    %v374 = vpop.f32.mrb[0].mxu0
    %v375 = vadd.f32 %v195, %v374
    %v376 = vpop.f32.mrb[0].mxu0
    %v377 = vpop.f32.mrb[0].mxu0
    %v378 = vadd.f32 %v195, %v377
    %v379 = vpop.f32.mrb[0].mxu0
    %380 = vmatprep.mubr.bf16.mxu0 0
    %381 = vmatmul.mubr.bf16.gmra.mrb[0].mxu0 %v189
    %v382 = vpop.f32.mrb[0].mxu0
    %v383 = vadd.f32 %v195, %v382
    %v384 = vpop.f32.mrb[0].mxu0
    %v385 = vpop.f32.mrb[0].mxu0
    %v386 = vadd.f32 %v195, %v385
    %v387 = vpop.f32.mrb[0].mxu0
    %388 = vmatprep.mubr.bf16.mxu0 0
    %389 = vmatmul.mubr.bf16.gmra.mrb[0].mxu0 %v190
    %v390 = vpop.f32.mrb[0].mxu0
    %v391 = vadd.f32 %v195, %v390
    %v392 = vpop.f32.mrb[0].mxu0
    %v393 = vpop.f32.mrb[0].mxu0
    %v394 = vadd.f32 %v195, %v393
    %v395 = vpop.f32.mrb[0].mxu0
    %396 = vmatprep.mubr.bf16.mxu0 0
    %397 = vmatmul.mubr.bf16.gmra.mrb[0].mxu0 %v191
    %v398 = vpop.f32.mrb[0].mxu0
    %v399 = vadd.f32 %v195, %v398
    %v400 = vpop.f32.mrb[0].mxu0
    %v401 = vpop.f32.mrb[0].mxu0
    %v402 = vadd.f32 %v195, %v401
    %v403 = vpop.f32.mrb[0].mxu0
    %404 = vdwg.mxu0
    %v405 = vmax.f32 %v279, 0.0
    %v406 = vmax.f32 %v282, 0.0
    %v407 = vmax.f32 %v287, 0.0
    %v408 = vmax.f32 %v290, 0.0
    %v409 = vmax.f32 %v295, 0.0
    %v410 = vmax.f32 %v298, 0.0
    %v411 = vmax.f32 %v303, 0.0
    %v412 = vmax.f32 %v306, 0.0
    %v413 = vmax.f32 %v311, 0.0
    %v414 = vmax.f32 %v314, 0.0
    %v415 = vmax.f32 %v319, 0.0
    %v416 = vmax.f32 %v322, 0.0
    %v417 = vmax.f32 %v327, 0.0
    %v418 = vmax.f32 %v330, 0.0
    %v419 = vmax.f32 %v335, 0.0
    %v420 = vmax.f32 %v338, 0.0
    %v421 = vmax.f32 %v343, 0.0
    %v422 = vmax.f32 %v346, 0.0
    %v423 = vmax.f32 %v351, 0.0
    %v424 = vmax.f32 %v354, 0.0
    %v425 = vmax.f32 %v359, 0.0
    %v426 = vmax.f32 %v362, 0.0
    %v427 = vmax.f32 %v367, 0.0
    %v428 = vmax.f32 %v370, 0.0
    %v429 = vmax.f32 %v375, 0.0
    %v430 = vmax.f32 %v378, 0.0
    %v431 = vmax.f32 %v383, 0.0
    %v432 = vmax.f32 %v386, 0.0
    %v433 = vmax.f32 %v391, 0.0
    %v434 = vmax.f32 %v394, 0.0
    %v435 = vmax.f32 %v399, 0.0
    %v436 = vmax.f32 %v402, 0.0
    %v437 = vld [vmem:[#allocation3 + $0x40] sm:$0xf]
    %v438 = vld [vmem:[#allocation3 + $0x44] sm:$0xf]
    %v439 = vld [vmem:[#allocation3 + $0x48] sm:$0xf]
    %v440 = vld [vmem:[#allocation3 + $0x4c] sm:$0xf]
    %v441 = vld [vmem:[#allocation3 + $0x50] sm:$0xf]
    %v442 = vld [vmem:[#allocation3 + $0x54] sm:$0xf]
    %v443 = vld [vmem:[#allocation3 + $0x58] sm:$0xf]
    %v444 = vld [vmem:[#allocation3 + $0x5c] sm:$0xf]
    %v445 = vld [vmem:[#allocation3 + $0x60] sm:$0xf]
    %v446 = vld [vmem:[#allocation3 + $0x64] sm:$0xf]
    %v447 = vld [vmem:[#allocation3 + $0x68] sm:$0xf]
    %v448 = vld [vmem:[#allocation3 + $0x6c] sm:$0xf]
    %v449 = vld [vmem:[#allocation3 + $0x70] sm:$0xf]
    %v450 = vld [vmem:[#allocation3 + $0x74] sm:$0xf]
    %v451 = vld [vmem:[#allocation3 + $0x78] sm:$0xf]
    %v452 = vld [vmem:[#allocation3 + $0x7c] sm:$0xf]
    %v453 = vld [vmem:[%s2 + $0x1] sm:$0x1]
    %v454 = vpack.c.bf16 %v406, %v405
    %v455 = vpack.c.bf16 %v408, %v407
    %v456 = vpack.c.bf16 %v410, %v409
    %v457 = vpack.c.bf16 %v412, %v411
    %v458 = vpack.c.bf16 %v414, %v413
    %v459 = vpack.c.bf16 %v416, %v415
    %v460 = vpack.c.bf16 %v418, %v417
    %v461 = vpack.c.bf16 %v420, %v419
    %v462 = vpack.c.bf16 %v422, %v421
    %v463 = vpack.c.bf16 %v424, %v423
    %v464 = vpack.c.bf16 %v426, %v425
    %v465 = vpack.c.bf16 %v428, %v427
    %v466 = vpack.c.bf16 %v430, %v429
    %v467 = vpack.c.bf16 %v432, %v431
    %v468 = vpack.c.bf16 %v434, %v433
    %v469 = vpack.c.bf16 %v436, %v435
    %v470 = vlaneseq
    %v471 = vshrl.u32 %v470, 7
    %v472 = vsub.s32 0, %v471
    %v473 = vrot.slane %v453, %v472
    %v490 = vunpack.c.l.b16 %v437
    %v491 = vunpack.c.l.b16 %v438
    %v492 = vunpack.c.l.b16 %v439
    %v493 = vunpack.c.l.b16 %v440
    %v494 = vunpack.c.l.b16 %v441
    %v495 = vunpack.c.l.b16 %v442
    %v496 = vunpack.c.l.b16 %v443
    %v497 = vunpack.c.l.b16 %v444
    %v498 = vunpack.c.l.b16 %v445
    %v499 = vunpack.c.l.b16 %v446
    %v500 = vunpack.c.l.b16 %v447
    %v501 = vunpack.c.l.b16 %v448
    %v502 = vunpack.c.l.b16 %v449
    %v503 = vunpack.c.l.b16 %v450
    %v504 = vunpack.c.l.b16 %v451
    %v505 = vunpack.c.l.b16 %v452
    %v506 = vpack.c.b16 %v491, %v490
    %v507 = vpack.c.b16 %v493, %v492
    %v508 = vpack.c.b16 %v495, %v494
    %v509 = vpack.c.b16 %v497, %v496
    %v510 = vpack.c.b16 %v499, %v498
    %v511 = vpack.c.b16 %v501, %v500
    %v512 = vpack.c.b16 %v503, %v502
    %v513 = vpack.c.b16 %v505, %v504
    %522 = vmatprep.subr.bf16.mxu0 0
    %523 = vmatpush1.bf16.msra.mxu0 %v506
    %524 = vmatprep.subr.bf16.mxu0 0
    %525 = vmatpush1.bf16.msra.mxu0 %v507
    %526 = vmatprep.subr.bf16.mxu0 0
    %527 = vmatpush1.bf16.msra.mxu0 %v508
    %528 = vmatprep.subr.bf16.mxu0 0
    %529 = vmatpush1.bf16.msra.mxu0 %v509
    %530 = vmatprep.subr.bf16.mxu0 0
    %531 = vmatpush1.bf16.msra.mxu0 %v510
    %532 = vmatprep.subr.bf16.mxu0 0
    %533 = vmatpush1.bf16.msra.mxu0 %v511
    %534 = vmatprep.subr.bf16.mxu0 0
    %535 = vmatpush1.bf16.msra.mxu0 %v512
    %536 = vmatprep.subr.bf16.mxu0 0
    %537 = vmatpush1.bf16.msra.mxu0 %v513
    %538 = vmatprep.subr.bf16.mxu0 0
    %539 = vmatpush1.bf16.msra.mxu0 0
    %540 = vmatprep.subr.bf16.mxu0 0
    %541 = vmatpush1.bf16.msra.mxu0 0
    %542 = vmatprep.subr.bf16.mxu0 0
    %543 = vmatpush1.bf16.msra.mxu0 0
    %544 = vmatprep.subr.bf16.mxu0 0
    %545 = vmatpush1.bf16.msra.mxu0 0
    %546 = vmatprep.subr.bf16.mxu0 0
    %547 = vmatpush1.bf16.msra.mxu0 0
    %548 = vmatprep.subr.bf16.mxu0 0
    %549 = vmatpush1.bf16.msra.mxu0 0
    %550 = vmatprep.subr.bf16.mxu0 0
    %551 = vmatpush1.bf16.msra.mxu0 0
    %552 = vmatprep.subr.bf16.mxu0 0
    %553 = vmatpush1.bf16.msra.mxu0 0
    %554 = vmatprep.mubr.bf16.mxu0 0
    %555 = vmatmul.mubr.bf16.gmra.mrb[0].mxu0 %v454
    %v556 = vpop.f32.mrb[0].mxu0
    %v557 = vadd.f32 %v473, %v556
    %v558 = vpop.f32.mrb[0].mxu0
    %v559 = vpop.f32.mrb[0].mxu0
    %v560 = vadd.f32 %v473, %v559
    %v561 = vpop.f32.mrb[0].mxu0
    %562 = vmatprep.mubr.bf16.mxu0 0
    %563 = vmatmul.mubr.bf16.gmra.mrb[0].mxu0 %v455
    %v564 = vpop.f32.mrb[0].mxu0
    %v565 = vadd.f32 %v473, %v564
    %v566 = vpop.f32.mrb[0].mxu0
    %v567 = vpop.f32.mrb[0].mxu0
    %v568 = vadd.f32 %v473, %v567
    %v569 = vpop.f32.mrb[0].mxu0
    %570 = vmatprep.mubr.bf16.mxu0 0
    %571 = vmatmul.mubr.bf16.gmra.mrb[0].mxu0 %v456
    %v572 = vpop.f32.mrb[0].mxu0
    %v573 = vadd.f32 %v473, %v572
    %v574 = vpop.f32.mrb[0].mxu0
    %v575 = vpop.f32.mrb[0].mxu0
    %v576 = vadd.f32 %v473, %v575
    %v577 = vpop.f32.mrb[0].mxu0
    %578 = vmatprep.mubr.bf16.mxu0 0
    %579 = vmatmul.mubr.bf16.gmra.mrb[0].mxu0 %v457
    %v580 = vpop.f32.mrb[0].mxu0
    %v581 = vadd.f32 %v473, %v580
    %v582 = vpop.f32.mrb[0].mxu0
    %v583 = vpop.f32.mrb[0].mxu0
    %v584 = vadd.f32 %v473, %v583
    %v585 = vpop.f32.mrb[0].mxu0
    %586 = vmatprep.mubr.bf16.mxu0 0
    %587 = vmatmul.mubr.bf16.gmra.mrb[0].mxu0 %v458
    %v588 = vpop.f32.mrb[0].mxu0
    %v589 = vadd.f32 %v473, %v588
    %v590 = vpop.f32.mrb[0].mxu0
    %v591 = vpop.f32.mrb[0].mxu0
    %v592 = vadd.f32 %v473, %v591
    %v593 = vpop.f32.mrb[0].mxu0
    %594 = vmatprep.mubr.bf16.mxu0 0
    %595 = vmatmul.mubr.bf16.gmra.mrb[0].mxu0 %v459
    %v596 = vpop.f32.mrb[0].mxu0
    %v597 = vadd.f32 %v473, %v596
    %v598 = vpop.f32.mrb[0].mxu0
    %v599 = vpop.f32.mrb[0].mxu0
    %v600 = vadd.f32 %v473, %v599
    %v601 = vpop.f32.mrb[0].mxu0
    %602 = vmatprep.mubr.bf16.mxu0 0
    %603 = vmatmul.mubr.bf16.gmra.mrb[0].mxu0 %v460
    %v604 = vpop.f32.mrb[0].mxu0
    %v605 = vadd.f32 %v473, %v604
    %v606 = vpop.f32.mrb[0].mxu0
    %v607 = vpop.f32.mrb[0].mxu0
    %v608 = vadd.f32 %v473, %v607
    %v609 = vpop.f32.mrb[0].mxu0
    %610 = vmatprep.mubr.bf16.mxu0 0
    %611 = vmatmul.mubr.bf16.gmra.mrb[0].mxu0 %v461
    %v612 = vpop.f32.mrb[0].mxu0
    %v613 = vadd.f32 %v473, %v612
    %v614 = vpop.f32.mrb[0].mxu0
    %v615 = vpop.f32.mrb[0].mxu0
    %v616 = vadd.f32 %v473, %v615
    %v617 = vpop.f32.mrb[0].mxu0
    %618 = vmatprep.mubr.bf16.mxu0 0
    %619 = vmatmul.mubr.bf16.gmra.mrb[0].mxu0 %v462
    %v620 = vpop.f32.mrb[0].mxu0
    %v621 = vadd.f32 %v473, %v620
    %v622 = vpop.f32.mrb[0].mxu0
    %v623 = vpop.f32.mrb[0].mxu0
    %v624 = vadd.f32 %v473, %v623
    %v625 = vpop.f32.mrb[0].mxu0
    %626 = vmatprep.mubr.bf16.mxu0 0
    %627 = vmatmul.mubr.bf16.gmra.mrb[0].mxu0 %v463
    %v628 = vpop.f32.mrb[0].mxu0
    %v629 = vadd.f32 %v473, %v628
    %v630 = vpop.f32.mrb[0].mxu0
    %v631 = vpop.f32.mrb[0].mxu0
    %v632 = vadd.f32 %v473, %v631
    %v633 = vpop.f32.mrb[0].mxu0
    %634 = vmatprep.mubr.bf16.mxu0 0
    %635 = vmatmul.mubr.bf16.gmra.mrb[0].mxu0 %v464
    %v636 = vpop.f32.mrb[0].mxu0
    %v637 = vadd.f32 %v473, %v636
    %v638 = vpop.f32.mrb[0].mxu0
    %v639 = vpop.f32.mrb[0].mxu0
    %v640 = vadd.f32 %v473, %v639
    %v641 = vpop.f32.mrb[0].mxu0
    %642 = vmatprep.mubr.bf16.mxu0 0
    %643 = vmatmul.mubr.bf16.gmra.mrb[0].mxu0 %v465
    %v644 = vpop.f32.mrb[0].mxu0
    %v645 = vadd.f32 %v473, %v644
    %v646 = vpop.f32.mrb[0].mxu0
    %v647 = vpop.f32.mrb[0].mxu0
    %v648 = vadd.f32 %v473, %v647
    %v649 = vpop.f32.mrb[0].mxu0
    %650 = vmatprep.mubr.bf16.mxu0 0
    %651 = vmatmul.mubr.bf16.gmra.mrb[0].mxu0 %v466
    %v652 = vpop.f32.mrb[0].mxu0
    %v653 = vadd.f32 %v473, %v652
    %v654 = vpop.f32.mrb[0].mxu0
    %v655 = vpop.f32.mrb[0].mxu0
    %v656 = vadd.f32 %v473, %v655
    %v657 = vpop.f32.mrb[0].mxu0
    %658 = vmatprep.mubr.bf16.mxu0 0
    %659 = vmatmul.mubr.bf16.gmra.mrb[0].mxu0 %v467
    %v660 = vpop.f32.mrb[0].mxu0
    %v661 = vadd.f32 %v473, %v660
    %v662 = vpop.f32.mrb[0].mxu0
    %v663 = vpop.f32.mrb[0].mxu0
    %v664 = vadd.f32 %v473, %v663
    %v665 = vpop.f32.mrb[0].mxu0
    %666 = vmatprep.mubr.bf16.mxu0 0
    %667 = vmatmul.mubr.bf16.gmra.mrb[0].mxu0 %v468
    %v668 = vpop.f32.mrb[0].mxu0
    %v669 = vadd.f32 %v473, %v668
    %v670 = vpop.f32.mrb[0].mxu0
    %v671 = vpop.f32.mrb[0].mxu0
    %v672 = vadd.f32 %v473, %v671
    %v673 = vpop.f32.mrb[0].mxu0
    %674 = vmatprep.mubr.bf16.mxu0 0
    %675 = vmatmul.mubr.bf16.gmra.mrb[0].mxu0 %v469
    %v676 = vpop.f32.mrb[0].mxu0
    %v677 = vadd.f32 %v473, %v676
    %v678 = vpop.f32.mrb[0].mxu0
    %v679 = vpop.f32.mrb[0].mxu0
    %v680 = vadd.f32 %v473, %v679
    %v681 = vpop.f32.mrb[0].mxu0
    %682 = vdwg.mxu0
    %v683 = vmax.f32 %v557, 0.0
    %v684 = vmax.f32 %v560, 0.0
    %v685 = vmax.f32 %v565, 0.0
    %v686 = vmax.f32 %v568, 0.0
    %v687 = vmax.f32 %v573, 0.0
    %v688 = vmax.f32 %v576, 0.0
    %v689 = vmax.f32 %v581, 0.0
    %v690 = vmax.f32 %v584, 0.0
    %v691 = vmax.f32 %v589, 0.0
    %v692 = vmax.f32 %v592, 0.0
    %v693 = vmax.f32 %v597, 0.0
    %v694 = vmax.f32 %v600, 0.0
    %v695 = vmax.f32 %v605, 0.0
    %v696 = vmax.f32 %v608, 0.0
    %v697 = vmax.f32 %v613, 0.0
    %v698 = vmax.f32 %v616, 0.0
    %v699 = vmax.f32 %v621, 0.0
    %v700 = vmax.f32 %v624, 0.0
    %v701 = vmax.f32 %v629, 0.0
    %v702 = vmax.f32 %v632, 0.0
    %v703 = vmax.f32 %v637, 0.0
    %v704 = vmax.f32 %v640, 0.0
    %v705 = vmax.f32 %v645, 0.0
    %v706 = vmax.f32 %v648, 0.0
    %v707 = vmax.f32 %v653, 0.0
    %v708 = vmax.f32 %v656, 0.0
    %v709 = vmax.f32 %v661, 0.0
    %v710 = vmax.f32 %v664, 0.0
    %v711 = vmax.f32 %v669, 0.0
    %v712 = vmax.f32 %v672, 0.0
    %v713 = vmax.f32 %v677, 0.0
    %v714 = vmax.f32 %v680, 0.0
    %v715 = vld [vmem:[#allocation3 + $0x80] sm:$0xf]
    %v716 = vld [vmem:[#allocation3 + $0x84] sm:$0xf]
    %v717 = vld [vmem:[#allocation3 + $0x88] sm:$0xf]
    %v718 = vld [vmem:[#allocation3 + $0x8c] sm:$0xf]
    %v719 = vld [vmem:[#allocation3 + $0x90] sm:$0xf]
    %v720 = vld [vmem:[#allocation3 + $0x94] sm:$0xf]
    %v721 = vld [vmem:[#allocation3 + $0x98] sm:$0xf]
    %v722 = vld [vmem:[#allocation3 + $0x9c] sm:$0xf]
    %v723 = vld [vmem:[#allocation3 + $0xa0] sm:$0xf]
    %v724 = vld [vmem:[#allocation3 + $0xa4] sm:$0xf]
    %v725 = vld [vmem:[#allocation3 + $0xa8] sm:$0xf]
    %v726 = vld [vmem:[#allocation3 + $0xac] sm:$0xf]
    %v727 = vld [vmem:[#allocation3 + $0xb0] sm:$0xf]
    %v728 = vld [vmem:[#allocation3 + $0xb4] sm:$0xf]
    %v729 = vld [vmem:[#allocation3 + $0xb8] sm:$0xf]
    %v730 = vld [vmem:[#allocation3 + $0xbc] sm:$0xf]
    %v731 = vld [vmem:[%s2 + $0x2] sm:$0x1]
    %v732 = vpack.c.bf16 %v684, %v683
    %v733 = vpack.c.bf16 %v686, %v685
    %v734 = vpack.c.bf16 %v688, %v687
    %v735 = vpack.c.bf16 %v690, %v689
    %v736 = vpack.c.bf16 %v692, %v691
    %v737 = vpack.c.bf16 %v694, %v693
    %v738 = vpack.c.bf16 %v696, %v695
    %v739 = vpack.c.bf16 %v698, %v697
    %v740 = vpack.c.bf16 %v700, %v699
    %v741 = vpack.c.bf16 %v702, %v701
    %v742 = vpack.c.bf16 %v704, %v703
    %v743 = vpack.c.bf16 %v706, %v705
    %v744 = vpack.c.bf16 %v708, %v707
    %v745 = vpack.c.bf16 %v710, %v709
    %v746 = vpack.c.bf16 %v712, %v711
    %v747 = vpack.c.bf16 %v714, %v713
    %v748 = vlaneseq
    %v749 = vshrl.u32 %v748, 7
    %v750 = vsub.s32 0, %v749
    %v751 = vrot.slane %v731, %v750
    %v768 = vunpack.c.l.b16 %v715
    %v769 = vunpack.c.l.b16 %v716
    %v770 = vunpack.c.l.b16 %v717
    %v771 = vunpack.c.l.b16 %v718
    %v772 = vunpack.c.l.b16 %v719
    %v773 = vunpack.c.l.b16 %v720
    %v774 = vunpack.c.l.b16 %v721
    %v775 = vunpack.c.l.b16 %v722
    %v776 = vunpack.c.l.b16 %v723
    %v777 = vunpack.c.l.b16 %v724
    %v778 = vunpack.c.l.b16 %v725
    %v779 = vunpack.c.l.b16 %v726
    %v780 = vunpack.c.l.b16 %v727
    %v781 = vunpack.c.l.b16 %v728
    %v782 = vunpack.c.l.b16 %v729
    %v783 = vunpack.c.l.b16 %v730
    %v784 = vpack.c.b16 %v769, %v768
    %v785 = vpack.c.b16 %v771, %v770
    %v786 = vpack.c.b16 %v773, %v772
    %v787 = vpack.c.b16 %v775, %v774
    %v788 = vpack.c.b16 %v777, %v776
    %v789 = vpack.c.b16 %v779, %v778
    %v790 = vpack.c.b16 %v781, %v780
    %v791 = vpack.c.b16 %v783, %v782
    %800 = vmatprep.subr.bf16.mxu0 0
    %801 = vmatpush1.bf16.msra.mxu0 %v784
    %802 = vmatprep.subr.bf16.mxu0 0
    %803 = vmatpush1.bf16.msra.mxu0 %v785
    %804 = vmatprep.subr.bf16.mxu0 0
    %805 = vmatpush1.bf16.msra.mxu0 %v786
    %806 = vmatprep.subr.bf16.mxu0 0
    %807 = vmatpush1.bf16.msra.mxu0 %v787
    %808 = vmatprep.subr.bf16.mxu0 0
    %809 = vmatpush1.bf16.msra.mxu0 %v788
    %810 = vmatprep.subr.bf16.mxu0 0
    %811 = vmatpush1.bf16.msra.mxu0 %v789
    %812 = vmatprep.subr.bf16.mxu0 0
    %813 = vmatpush1.bf16.msra.mxu0 %v790
    %814 = vmatprep.subr.bf16.mxu0 0
    %815 = vmatpush1.bf16.msra.mxu0 %v791
    %816 = vmatprep.subr.bf16.mxu0 0
    %817 = vmatpush1.bf16.msra.mxu0 0
    %818 = vmatprep.subr.bf16.mxu0 0
    %819 = vmatpush1.bf16.msra.mxu0 0
    %820 = vmatprep.subr.bf16.mxu0 0
    %821 = vmatpush1.bf16.msra.mxu0 0
    %822 = vmatprep.subr.bf16.mxu0 0
    %823 = vmatpush1.bf16.msra.mxu0 0
    %824 = vmatprep.subr.bf16.mxu0 0
    %825 = vmatpush1.bf16.msra.mxu0 0
    %826 = vmatprep.subr.bf16.mxu0 0
    %827 = vmatpush1.bf16.msra.mxu0 0
    %828 = vmatprep.subr.bf16.mxu0 0
    %829 = vmatpush1.bf16.msra.mxu0 0
    %830 = vmatprep.subr.bf16.mxu0 0
    %831 = vmatpush1.bf16.msra.mxu0 0
    %832 = vmatprep.mubr.bf16.mxu0 0
    %833 = vmatmul.mubr.bf16.gmra.mrb[0].mxu0 %v732
    %v834 = vpop.f32.mrb[0].mxu0
    %v835 = vadd.f32 %v751, %v834
    %v836 = vpop.f32.mrb[0].mxu0
    %v837 = vpop.f32.mrb[0].mxu0
    %v838 = vadd.f32 %v751, %v837
    %v839 = vpop.f32.mrb[0].mxu0
    %840 = vmatprep.mubr.bf16.mxu0 0
    %841 = vmatmul.mubr.bf16.gmra.mrb[0].mxu0 %v733
    %v842 = vpop.f32.mrb[0].mxu0
    %v843 = vadd.f32 %v751, %v842
    %v844 = vpop.f32.mrb[0].mxu0
    %v845 = vpop.f32.mrb[0].mxu0
    %v846 = vadd.f32 %v751, %v845
    %v847 = vpop.f32.mrb[0].mxu0
    %848 = vmatprep.mubr.bf16.mxu0 0
    %849 = vmatmul.mubr.bf16.gmra.mrb[0].mxu0 %v734
    %v850 = vpop.f32.mrb[0].mxu0
    %v851 = vadd.f32 %v751, %v850
    %v852 = vpop.f32.mrb[0].mxu0
    %v853 = vpop.f32.mrb[0].mxu0
    %v854 = vadd.f32 %v751, %v853
    %v855 = vpop.f32.mrb[0].mxu0
    %856 = vmatprep.mubr.bf16.mxu0 0
    %857 = vmatmul.mubr.bf16.gmra.mrb[0].mxu0 %v735
    %v858 = vpop.f32.mrb[0].mxu0
    %v859 = vadd.f32 %v751, %v858
    %v860 = vpop.f32.mrb[0].mxu0
    %v861 = vpop.f32.mrb[0].mxu0
    %v862 = vadd.f32 %v751, %v861
    %v863 = vpop.f32.mrb[0].mxu0
    %864 = vmatprep.mubr.bf16.mxu0 0
    %865 = vmatmul.mubr.bf16.gmra.mrb[0].mxu0 %v736
    %v866 = vpop.f32.mrb[0].mxu0
    %v867 = vadd.f32 %v751, %v866
    %v868 = vpop.f32.mrb[0].mxu0
    %v869 = vpop.f32.mrb[0].mxu0
    %v870 = vadd.f32 %v751, %v869
    %v871 = vpop.f32.mrb[0].mxu0
    %872 = vmatprep.mubr.bf16.mxu0 0
    %873 = vmatmul.mubr.bf16.gmra.mrb[0].mxu0 %v737
    %v874 = vpop.f32.mrb[0].mxu0
    %v875 = vadd.f32 %v751, %v874
    %v876 = vpop.f32.mrb[0].mxu0
    %v877 = vpop.f32.mrb[0].mxu0
    %v878 = vadd.f32 %v751, %v877
    %v879 = vpop.f32.mrb[0].mxu0
    %880 = vmatprep.mubr.bf16.mxu0 0
    %881 = vmatmul.mubr.bf16.gmra.mrb[0].mxu0 %v738
    %v882 = vpop.f32.mrb[0].mxu0
    %v883 = vadd.f32 %v751, %v882
    %v884 = vpop.f32.mrb[0].mxu0
    %v885 = vpop.f32.mrb[0].mxu0
    %v886 = vadd.f32 %v751, %v885
    %v887 = vpop.f32.mrb[0].mxu0
    %888 = vmatprep.mubr.bf16.mxu0 0
    %889 = vmatmul.mubr.bf16.gmra.mrb[0].mxu0 %v739
    %v890 = vpop.f32.mrb[0].mxu0
    %v891 = vadd.f32 %v751, %v890
    %v892 = vpop.f32.mrb[0].mxu0
    %v893 = vpop.f32.mrb[0].mxu0
    %v894 = vadd.f32 %v751, %v893
    %v895 = vpop.f32.mrb[0].mxu0
    %896 = vmatprep.mubr.bf16.mxu0 0
    %897 = vmatmul.mubr.bf16.gmra.mrb[0].mxu0 %v740
    %v898 = vpop.f32.mrb[0].mxu0
    %v899 = vadd.f32 %v751, %v898
    %v900 = vpop.f32.mrb[0].mxu0
    %v901 = vpop.f32.mrb[0].mxu0
    %v902 = vadd.f32 %v751, %v901
    %v903 = vpop.f32.mrb[0].mxu0
    %904 = vmatprep.mubr.bf16.mxu0 0
    %905 = vmatmul.mubr.bf16.gmra.mrb[0].mxu0 %v741
    %v906 = vpop.f32.mrb[0].mxu0
    %v907 = vadd.f32 %v751, %v906
    %v908 = vpop.f32.mrb[0].mxu0
    %v909 = vpop.f32.mrb[0].mxu0
    %v910 = vadd.f32 %v751, %v909
    %v911 = vpop.f32.mrb[0].mxu0
    %912 = vmatprep.mubr.bf16.mxu0 0
    %913 = vmatmul.mubr.bf16.gmra.mrb[0].mxu0 %v742
    %v914 = vpop.f32.mrb[0].mxu0
    %v915 = vadd.f32 %v751, %v914
    %v916 = vpop.f32.mrb[0].mxu0
    %v917 = vpop.f32.mrb[0].mxu0
    %v918 = vadd.f32 %v751, %v917
    %v919 = vpop.f32.mrb[0].mxu0
    %920 = vmatprep.mubr.bf16.mxu0 0
    %921 = vmatmul.mubr.bf16.gmra.mrb[0].mxu0 %v743
    %v922 = vpop.f32.mrb[0].mxu0
    %v923 = vadd.f32 %v751, %v922
    %v924 = vpop.f32.mrb[0].mxu0
    %v925 = vpop.f32.mrb[0].mxu0
    %v926 = vadd.f32 %v751, %v925
    %v927 = vpop.f32.mrb[0].mxu0
    %928 = vmatprep.mubr.bf16.mxu0 0
    %929 = vmatmul.mubr.bf16.gmra.mrb[0].mxu0 %v744
    %v930 = vpop.f32.mrb[0].mxu0
    %v931 = vadd.f32 %v751, %v930
    %v932 = vpop.f32.mrb[0].mxu0
    %v933 = vpop.f32.mrb[0].mxu0
    %v934 = vadd.f32 %v751, %v933
    %v935 = vpop.f32.mrb[0].mxu0
    %936 = vmatprep.mubr.bf16.mxu0 0
    %937 = vmatmul.mubr.bf16.gmra.mrb[0].mxu0 %v745
    %v938 = vpop.f32.mrb[0].mxu0
    %v939 = vadd.f32 %v751, %v938
    %v940 = vpop.f32.mrb[0].mxu0
    %v941 = vpop.f32.mrb[0].mxu0
    %v942 = vadd.f32 %v751, %v941
    %v943 = vpop.f32.mrb[0].mxu0
    %944 = vmatprep.mubr.bf16.mxu0 0
    %945 = vmatmul.mubr.bf16.gmra.mrb[0].mxu0 %v746
    %v946 = vpop.f32.mrb[0].mxu0
    %v947 = vadd.f32 %v751, %v946
    %v948 = vpop.f32.mrb[0].mxu0
    %v949 = vpop.f32.mrb[0].mxu0
    %v950 = vadd.f32 %v751, %v949
    %v951 = vpop.f32.mrb[0].mxu0
    %952 = vmatprep.mubr.bf16.mxu0 0
    %953 = vmatmul.mubr.bf16.gmra.mrb[0].mxu0 %v747
    %v954 = vpop.f32.mrb[0].mxu0
    %v955 = vadd.f32 %v751, %v954
    %v956 = vpop.f32.mrb[0].mxu0
    %v957 = vpop.f32.mrb[0].mxu0
    %v958 = vadd.f32 %v751, %v957
    %v959 = vpop.f32.mrb[0].mxu0
    %960 = vdwg.mxu0
    %v961 = vmax.f32 %v835, 0.0
    %v962 = vmax.f32 %v838, 0.0
    %v963 = vmax.f32 %v843, 0.0
    %v964 = vmax.f32 %v846, 0.0
    %v965 = vmax.f32 %v851, 0.0
    %v966 = vmax.f32 %v854, 0.0
    %v967 = vmax.f32 %v859, 0.0
    %v968 = vmax.f32 %v862, 0.0
    %v969 = vmax.f32 %v867, 0.0
    %v970 = vmax.f32 %v870, 0.0
    %v971 = vmax.f32 %v875, 0.0
    %v972 = vmax.f32 %v878, 0.0
    %v973 = vmax.f32 %v883, 0.0
    %v974 = vmax.f32 %v886, 0.0
    %v975 = vmax.f32 %v891, 0.0
    %v976 = vmax.f32 %v894, 0.0
    %v977 = vmax.f32 %v899, 0.0
    %v978 = vmax.f32 %v902, 0.0
    %v979 = vmax.f32 %v907, 0.0
    %v980 = vmax.f32 %v910, 0.0
    %v981 = vmax.f32 %v915, 0.0
    %v982 = vmax.f32 %v918, 0.0
    %v983 = vmax.f32 %v923, 0.0
    %v984 = vmax.f32 %v926, 0.0
    %v985 = vmax.f32 %v931, 0.0
    %v986 = vmax.f32 %v934, 0.0
    %v987 = vmax.f32 %v939, 0.0
    %v988 = vmax.f32 %v942, 0.0
    %v989 = vmax.f32 %v947, 0.0
    %v990 = vmax.f32 %v950, 0.0
    %v991 = vmax.f32 %v955, 0.0
    %v992 = vmax.f32 %v958, 0.0
    %v993 = vld [vmem:[#allocation3 + $0xc0] sm:$0xf]
    %v994 = vld [vmem:[#allocation3 + $0xc4] sm:$0xf]
    %v995 = vld [vmem:[#allocation3 + $0xc8] sm:$0xf]
    %v996 = vld [vmem:[#allocation3 + $0xcc] sm:$0xf]
    %v997 = vld [vmem:[#allocation3 + $0xd0] sm:$0xf]
    %v998 = vld [vmem:[#allocation3 + $0xd4] sm:$0xf]
    %v999 = vld [vmem:[#allocation3 + $0xd8] sm:$0xf]
    %v1000 = vld [vmem:[#allocation3 + $0xdc] sm:$0xf]
    %v1001 = vld [vmem:[#allocation3 + $0xe0] sm:$0xf]
    %v1002 = vld [vmem:[#allocation3 + $0xe4] sm:$0xf]
    %v1003 = vld [vmem:[#allocation3 + $0xe8] sm:$0xf]
    %v1004 = vld [vmem:[#allocation3 + $0xec] sm:$0xf]
    %v1005 = vld [vmem:[#allocation3 + $0xf0] sm:$0xf]
    %v1006 = vld [vmem:[#allocation3 + $0xf4] sm:$0xf]
    %v1007 = vld [vmem:[#allocation3 + $0xf8] sm:$0xf]
    %v1008 = vld [vmem:[#allocation3 + $0xfc] sm:$0xf]
    %v1009 = vld [vmem:[%s2 + $0x3] sm:$0x1]
    %v1010 = vpack.c.bf16 %v962, %v961
    %v1011 = vpack.c.bf16 %v964, %v963
    %v1012 = vpack.c.bf16 %v966, %v965
    %v1013 = vpack.c.bf16 %v968, %v967
    %v1014 = vpack.c.bf16 %v970, %v969
    %v1015 = vpack.c.bf16 %v972, %v971
    %v1016 = vpack.c.bf16 %v974, %v973
    %v1017 = vpack.c.bf16 %v976, %v975
    %v1018 = vpack.c.bf16 %v978, %v977
    %v1019 = vpack.c.bf16 %v980, %v979
    %v1020 = vpack.c.bf16 %v982, %v981
    %v1021 = vpack.c.bf16 %v984, %v983
    %v1022 = vpack.c.bf16 %v986, %v985
    %v1023 = vpack.c.bf16 %v988, %v987
    %v1024 = vpack.c.bf16 %v990, %v989
    %v1025 = vpack.c.bf16 %v992, %v991
    %v1026 = vlaneseq
    %v1027 = vshrl.u32 %v1026, 7
    %v1028 = vsub.s32 0, %v1027
    %v1029 = vrot.slane %v1009, %v1028
    %v1046 = vunpack.c.l.b16 %v993
    %v1047 = vunpack.c.l.b16 %v994
    %v1048 = vunpack.c.l.b16 %v995
    %v1049 = vunpack.c.l.b16 %v996
    %v1050 = vunpack.c.l.b16 %v997
    %v1051 = vunpack.c.l.b16 %v998
    %v1052 = vunpack.c.l.b16 %v999
    %v1053 = vunpack.c.l.b16 %v1000
    %v1054 = vunpack.c.l.b16 %v1001
    %v1055 = vunpack.c.l.b16 %v1002
    %v1056 = vunpack.c.l.b16 %v1003
    %v1057 = vunpack.c.l.b16 %v1004
    %v1058 = vunpack.c.l.b16 %v1005
    %v1059 = vunpack.c.l.b16 %v1006
    %v1060 = vunpack.c.l.b16 %v1007
    %v1061 = vunpack.c.l.b16 %v1008
    %v1062 = vpack.c.b16 %v1047, %v1046
    %v1063 = vpack.c.b16 %v1049, %v1048
    %v1064 = vpack.c.b16 %v1051, %v1050
    %v1065 = vpack.c.b16 %v1053, %v1052
    %v1066 = vpack.c.b16 %v1055, %v1054
    %v1067 = vpack.c.b16 %v1057, %v1056
    %v1068 = vpack.c.b16 %v1059, %v1058
    %v1069 = vpack.c.b16 %v1061, %v1060
    %1078 = vmatprep.subr.bf16.mxu0 0
    %1079 = vmatpush1.bf16.msra.mxu0 %v1062
    %1080 = vmatprep.subr.bf16.mxu0 0
    %1081 = vmatpush1.bf16.msra.mxu0 %v1063
    %1082 = vmatprep.subr.bf16.mxu0 0
    %1083 = vmatpush1.bf16.msra.mxu0 %v1064
    %1084 = vmatprep.subr.bf16.mxu0 0
    %1085 = vmatpush1.bf16.msra.mxu0 %v1065
    %1086 = vmatprep.subr.bf16.mxu0 0
    %1087 = vmatpush1.bf16.msra.mxu0 %v1066
    %1088 = vmatprep.subr.bf16.mxu0 0
    %1089 = vmatpush1.bf16.msra.mxu0 %v1067
    %1090 = vmatprep.subr.bf16.mxu0 0
    %1091 = vmatpush1.bf16.msra.mxu0 %v1068
    %1092 = vmatprep.subr.bf16.mxu0 0
    %1093 = vmatpush1.bf16.msra.mxu0 %v1069
    %1094 = vmatprep.subr.bf16.mxu0 0
    %1095 = vmatpush1.bf16.msra.mxu0 0
    %1096 = vmatprep.subr.bf16.mxu0 0
    %1097 = vmatpush1.bf16.msra.mxu0 0
    %1098 = vmatprep.subr.bf16.mxu0 0
    %1099 = vmatpush1.bf16.msra.mxu0 0
    %1100 = vmatprep.subr.bf16.mxu0 0
    %1101 = vmatpush1.bf16.msra.mxu0 0
    %1102 = vmatprep.subr.bf16.mxu0 0
    %1103 = vmatpush1.bf16.msra.mxu0 0
    %1104 = vmatprep.subr.bf16.mxu0 0
    %1105 = vmatpush1.bf16.msra.mxu0 0
    %1106 = vmatprep.subr.bf16.mxu0 0
    %1107 = vmatpush1.bf16.msra.mxu0 0
    %1108 = vmatprep.subr.bf16.mxu0 0
    %1109 = vmatpush1.bf16.msra.mxu0 0
    %1110 = vmatprep.mubr.bf16.mxu0 0
    %1111 = vmatmul.mubr.bf16.gmra.mrb[0].mxu0 %v1010
    %v1112 = vpop.f32.mrb[0].mxu0
    %v1113 = vadd.f32 %v1029, %v1112
    %v1114 = vpop.f32.mrb[0].mxu0
    %v1115 = vpop.f32.mrb[0].mxu0
    %v1116 = vadd.f32 %v1029, %v1115
    %v1117 = vpop.f32.mrb[0].mxu0
    %1118 = vmatprep.mubr.bf16.mxu0 0
    %1119 = vmatmul.mubr.bf16.gmra.mrb[0].mxu0 %v1011
    %v1120 = vpop.f32.mrb[0].mxu0
    %v1121 = vadd.f32 %v1029, %v1120
    %v1122 = vpop.f32.mrb[0].mxu0
    %v1123 = vpop.f32.mrb[0].mxu0
    %v1124 = vadd.f32 %v1029, %v1123
    %v1125 = vpop.f32.mrb[0].mxu0
    %1126 = vmatprep.mubr.bf16.mxu0 0
    %1127 = vmatmul.mubr.bf16.gmra.mrb[0].mxu0 %v1012
    %v1128 = vpop.f32.mrb[0].mxu0
    %v1129 = vadd.f32 %v1029, %v1128
    %v1130 = vpop.f32.mrb[0].mxu0
    %v1131 = vpop.f32.mrb[0].mxu0
    %v1132 = vadd.f32 %v1029, %v1131
    %v1133 = vpop.f32.mrb[0].mxu0
    %1134 = vmatprep.mubr.bf16.mxu0 0
    %1135 = vmatmul.mubr.bf16.gmra.mrb[0].mxu0 %v1013
    %v1136 = vpop.f32.mrb[0].mxu0
    %v1137 = vadd.f32 %v1029, %v1136
    %v1138 = vpop.f32.mrb[0].mxu0
    %v1139 = vpop.f32.mrb[0].mxu0
    %v1140 = vadd.f32 %v1029, %v1139
    %v1141 = vpop.f32.mrb[0].mxu0
    %1142 = vmatprep.mubr.bf16.mxu0 0
    %1143 = vmatmul.mubr.bf16.gmra.mrb[0].mxu0 %v1014
    %v1144 = vpop.f32.mrb[0].mxu0
    %v1145 = vadd.f32 %v1029, %v1144
    %v1146 = vpop.f32.mrb[0].mxu0
    %v1147 = vpop.f32.mrb[0].mxu0
    %v1148 = vadd.f32 %v1029, %v1147
    %v1149 = vpop.f32.mrb[0].mxu0
    %1150 = vmatprep.mubr.bf16.mxu0 0
    %1151 = vmatmul.mubr.bf16.gmra.mrb[0].mxu0 %v1015
    %v1152 = vpop.f32.mrb[0].mxu0
    %v1153 = vadd.f32 %v1029, %v1152
    %v1154 = vpop.f32.mrb[0].mxu0
    %v1155 = vpop.f32.mrb[0].mxu0
    %v1156 = vadd.f32 %v1029, %v1155
    %v1157 = vpop.f32.mrb[0].mxu0
    %1158 = vmatprep.mubr.bf16.mxu0 0
    %1159 = vmatmul.mubr.bf16.gmra.mrb[0].mxu0 %v1016
    %v1160 = vpop.f32.mrb[0].mxu0
    %v1161 = vadd.f32 %v1029, %v1160
    %v1162 = vpop.f32.mrb[0].mxu0
    %v1163 = vpop.f32.mrb[0].mxu0
    %v1164 = vadd.f32 %v1029, %v1163
    %v1165 = vpop.f32.mrb[0].mxu0
    %1166 = vmatprep.mubr.bf16.mxu0 0
    %1167 = vmatmul.mubr.bf16.gmra.mrb[0].mxu0 %v1017
    %v1168 = vpop.f32.mrb[0].mxu0
    %v1169 = vadd.f32 %v1029, %v1168
    %v1170 = vpop.f32.mrb[0].mxu0
    %v1171 = vpop.f32.mrb[0].mxu0
    %v1172 = vadd.f32 %v1029, %v1171
    %v1173 = vpop.f32.mrb[0].mxu0
    %1174 = vmatprep.mubr.bf16.mxu0 0
    %1175 = vmatmul.mubr.bf16.gmra.mrb[0].mxu0 %v1018
    %v1176 = vpop.f32.mrb[0].mxu0
    %v1177 = vadd.f32 %v1029, %v1176
    %v1178 = vpop.f32.mrb[0].mxu0
    %v1179 = vpop.f32.mrb[0].mxu0
    %v1180 = vadd.f32 %v1029, %v1179
    %v1181 = vpop.f32.mrb[0].mxu0
    %1182 = vmatprep.mubr.bf16.mxu0 0
    %1183 = vmatmul.mubr.bf16.gmra.mrb[0].mxu0 %v1019
    %v1184 = vpop.f32.mrb[0].mxu0
    %v1185 = vadd.f32 %v1029, %v1184
    %v1186 = vpop.f32.mrb[0].mxu0
    %v1187 = vpop.f32.mrb[0].mxu0
    %v1188 = vadd.f32 %v1029, %v1187
    %v1189 = vpop.f32.mrb[0].mxu0
    %1190 = vmatprep.mubr.bf16.mxu0 0
    %1191 = vmatmul.mubr.bf16.gmra.mrb[0].mxu0 %v1020
    %v1192 = vpop.f32.mrb[0].mxu0
    %v1193 = vadd.f32 %v1029, %v1192
    %v1194 = vpop.f32.mrb[0].mxu0
    %v1195 = vpop.f32.mrb[0].mxu0
    %v1196 = vadd.f32 %v1029, %v1195
    %v1197 = vpop.f32.mrb[0].mxu0
    %1198 = vmatprep.mubr.bf16.mxu0 0
    %1199 = vmatmul.mubr.bf16.gmra.mrb[0].mxu0 %v1021
    %v1200 = vpop.f32.mrb[0].mxu0
    %v1201 = vadd.f32 %v1029, %v1200
    %v1202 = vpop.f32.mrb[0].mxu0
    %v1203 = vpop.f32.mrb[0].mxu0
    %v1204 = vadd.f32 %v1029, %v1203
    %v1205 = vpop.f32.mrb[0].mxu0
    %1206 = vmatprep.mubr.bf16.mxu0 0
    %1207 = vmatmul.mubr.bf16.gmra.mrb[0].mxu0 %v1022
    %v1208 = vpop.f32.mrb[0].mxu0
    %v1209 = vadd.f32 %v1029, %v1208
    %v1210 = vpop.f32.mrb[0].mxu0
    %v1211 = vpop.f32.mrb[0].mxu0
    %v1212 = vadd.f32 %v1029, %v1211
    %v1213 = vpop.f32.mrb[0].mxu0
    %1214 = vmatprep.mubr.bf16.mxu0 0
    %1215 = vmatmul.mubr.bf16.gmra.mrb[0].mxu0 %v1023
    %v1216 = vpop.f32.mrb[0].mxu0
    %v1217 = vadd.f32 %v1029, %v1216
    %v1218 = vpop.f32.mrb[0].mxu0
    %v1219 = vpop.f32.mrb[0].mxu0
    %v1220 = vadd.f32 %v1029, %v1219
    %v1221 = vpop.f32.mrb[0].mxu0
    %1222 = vmatprep.mubr.bf16.mxu0 0
    %1223 = vmatmul.mubr.bf16.gmra.mrb[0].mxu0 %v1024
    %v1224 = vpop.f32.mrb[0].mxu0
    %v1225 = vadd.f32 %v1029, %v1224
    %v1226 = vpop.f32.mrb[0].mxu0
    %v1227 = vpop.f32.mrb[0].mxu0
    %v1228 = vadd.f32 %v1029, %v1227
    %v1229 = vpop.f32.mrb[0].mxu0
    %1230 = vmatprep.mubr.bf16.mxu0 0
    %1231 = vmatmul.mubr.bf16.gmra.mrb[0].mxu0 %v1025
    %v1232 = vpop.f32.mrb[0].mxu0
    %v1233 = vadd.f32 %v1029, %v1232
    %v1234 = vpop.f32.mrb[0].mxu0
    %v1235 = vpop.f32.mrb[0].mxu0
    %v1236 = vadd.f32 %v1029, %v1235
    %v1237 = vpop.f32.mrb[0].mxu0
    %1238 = vdwg.mxu0
    %v1239 = vmax.f32 %v1113, 0.0
    %v1240 = vmax.f32 %v1116, 0.0
    %v1241 = vmax.f32 %v1121, 0.0
    %v1242 = vmax.f32 %v1124, 0.0
    %v1243 = vmax.f32 %v1129, 0.0
    %v1244 = vmax.f32 %v1132, 0.0
    %v1245 = vmax.f32 %v1137, 0.0
    %v1246 = vmax.f32 %v1140, 0.0
    %v1247 = vmax.f32 %v1145, 0.0
    %v1248 = vmax.f32 %v1148, 0.0
    %v1249 = vmax.f32 %v1153, 0.0
    %v1250 = vmax.f32 %v1156, 0.0
    %v1251 = vmax.f32 %v1161, 0.0
    %v1252 = vmax.f32 %v1164, 0.0
    %v1253 = vmax.f32 %v1169, 0.0
    %v1254 = vmax.f32 %v1172, 0.0
    %v1255 = vmax.f32 %v1177, 0.0
    %v1256 = vmax.f32 %v1180, 0.0
    %v1257 = vmax.f32 %v1185, 0.0
    %v1258 = vmax.f32 %v1188, 0.0
    %v1259 = vmax.f32 %v1193, 0.0
    %v1260 = vmax.f32 %v1196, 0.0
    %v1261 = vmax.f32 %v1201, 0.0
    %v1262 = vmax.f32 %v1204, 0.0
    %v1263 = vmax.f32 %v1209, 0.0
    %v1264 = vmax.f32 %v1212, 0.0
    %v1265 = vmax.f32 %v1217, 0.0
    %v1266 = vmax.f32 %v1220, 0.0
    %v1267 = vmax.f32 %v1225, 0.0
    %v1268 = vmax.f32 %v1228, 0.0
    %v1269 = vmax.f32 %v1233, 0.0
    %v1270 = vmax.f32 %v1236, 0.0
    %v1271 = vld [vmem:[#allocation3 + $0x100] sm:$0xf]
    %v1272 = vld [vmem:[#allocation3 + $0x104] sm:$0xf]
    %v1273 = vld [vmem:[#allocation3 + $0x108] sm:$0xf]
    %v1274 = vld [vmem:[#allocation3 + $0x10c] sm:$0xf]
    %v1275 = vld [vmem:[#allocation3 + $0x110] sm:$0xf]
    %v1276 = vld [vmem:[#allocation3 + $0x114] sm:$0xf]
    %v1277 = vld [vmem:[#allocation3 + $0x118] sm:$0xf]
    %v1278 = vld [vmem:[#allocation3 + $0x11c] sm:$0xf]
    %v1279 = vld [vmem:[#allocation3 + $0x120] sm:$0xf]
    %v1280 = vld [vmem:[#allocation3 + $0x124] sm:$0xf]
    %v1281 = vld [vmem:[#allocation3 + $0x128] sm:$0xf]
    %v1282 = vld [vmem:[#allocation3 + $0x12c] sm:$0xf]
    %v1283 = vld [vmem:[#allocation3 + $0x130] sm:$0xf]
    %v1284 = vld [vmem:[#allocation3 + $0x134] sm:$0xf]
    %v1285 = vld [vmem:[#allocation3 + $0x138] sm:$0xf]
    %v1286 = vld [vmem:[#allocation3 + $0x13c] sm:$0xf]
    %v1287 = vld [vmem:[%s2 + $0x4] sm:$0x1]
    %v1288 = vpack.c.bf16 %v1240, %v1239
    %v1289 = vpack.c.bf16 %v1242, %v1241
    %v1290 = vpack.c.bf16 %v1244, %v1243
    %v1291 = vpack.c.bf16 %v1246, %v1245
    %v1292 = vpack.c.bf16 %v1248, %v1247
    %v1293 = vpack.c.bf16 %v1250, %v1249
    %v1294 = vpack.c.bf16 %v1252, %v1251
    %v1295 = vpack.c.bf16 %v1254, %v1253
    %v1296 = vpack.c.bf16 %v1256, %v1255
    %v1297 = vpack.c.bf16 %v1258, %v1257
    %v1298 = vpack.c.bf16 %v1260, %v1259
    %v1299 = vpack.c.bf16 %v1262, %v1261
    %v1300 = vpack.c.bf16 %v1264, %v1263
    %v1301 = vpack.c.bf16 %v1266, %v1265
    %v1302 = vpack.c.bf16 %v1268, %v1267
    %v1303 = vpack.c.bf16 %v1270, %v1269
    %v1304 = vlaneseq
    %v1305 = vshrl.u32 %v1304, 7
    %v1306 = vsub.s32 0, %v1305
    %v1307 = vrot.slane %v1287, %v1306
    %v1324 = vunpack.c.l.b16 %v1271
    %v1325 = vunpack.c.l.b16 %v1272
    %v1326 = vunpack.c.l.b16 %v1273
    %v1327 = vunpack.c.l.b16 %v1274
    %v1328 = vunpack.c.l.b16 %v1275
    %v1329 = vunpack.c.l.b16 %v1276
    %v1330 = vunpack.c.l.b16 %v1277
    %v1331 = vunpack.c.l.b16 %v1278
    %v1332 = vunpack.c.l.b16 %v1279
    %v1333 = vunpack.c.l.b16 %v1280
    %v1334 = vunpack.c.l.b16 %v1281
    %v1335 = vunpack.c.l.b16 %v1282
    %v1336 = vunpack.c.l.b16 %v1283
    %v1337 = vunpack.c.l.b16 %v1284
    %v1338 = vunpack.c.l.b16 %v1285
    %v1339 = vunpack.c.l.b16 %v1286
    %v1340 = vpack.c.b16 %v1325, %v1324
    %v1341 = vpack.c.b16 %v1327, %v1326
    %v1342 = vpack.c.b16 %v1329, %v1328
    %v1343 = vpack.c.b16 %v1331, %v1330
    %v1344 = vpack.c.b16 %v1333, %v1332
    %v1345 = vpack.c.b16 %v1335, %v1334
    %v1346 = vpack.c.b16 %v1337, %v1336
    %v1347 = vpack.c.b16 %v1339, %v1338
    %1356 = vmatprep.subr.bf16.mxu0 0
    %1357 = vmatpush1.bf16.msra.mxu0 %v1340
    %1358 = vmatprep.subr.bf16.mxu0 0
    %1359 = vmatpush1.bf16.msra.mxu0 %v1341
    %1360 = vmatprep.subr.bf16.mxu0 0
    %1361 = vmatpush1.bf16.msra.mxu0 %v1342
    %1362 = vmatprep.subr.bf16.mxu0 0
    %1363 = vmatpush1.bf16.msra.mxu0 %v1343
    %1364 = vmatprep.subr.bf16.mxu0 0
    %1365 = vmatpush1.bf16.msra.mxu0 %v1344
    %1366 = vmatprep.subr.bf16.mxu0 0
    %1367 = vmatpush1.bf16.msra.mxu0 %v1345
    %1368 = vmatprep.subr.bf16.mxu0 0
    %1369 = vmatpush1.bf16.msra.mxu0 %v1346
    %1370 = vmatprep.subr.bf16.mxu0 0
    %1371 = vmatpush1.bf16.msra.mxu0 %v1347
    %1372 = vmatprep.subr.bf16.mxu0 0
    %1373 = vmatpush1.bf16.msra.mxu0 0
    %1374 = vmatprep.subr.bf16.mxu0 0
    %1375 = vmatpush1.bf16.msra.mxu0 0
    %1376 = vmatprep.subr.bf16.mxu0 0
    %1377 = vmatpush1.bf16.msra.mxu0 0
    %1378 = vmatprep.subr.bf16.mxu0 0
    %1379 = vmatpush1.bf16.msra.mxu0 0
    %1380 = vmatprep.subr.bf16.mxu0 0
    %1381 = vmatpush1.bf16.msra.mxu0 0
    %1382 = vmatprep.subr.bf16.mxu0 0
    %1383 = vmatpush1.bf16.msra.mxu0 0
    %1384 = vmatprep.subr.bf16.mxu0 0
    %1385 = vmatpush1.bf16.msra.mxu0 0
    %1386 = vmatprep.subr.bf16.mxu0 0
    %1387 = vmatpush1.bf16.msra.mxu0 0
    %1388 = vmatprep.mubr.bf16.mxu0 0
    %1389 = vmatmul.mubr.bf16.gmra.mrb[0].mxu0 %v1288
    %v1390 = vpop.f32.mrb[0].mxu0
    %v1391 = vadd.f32 %v1307, %v1390
    %v1392 = vpop.f32.mrb[0].mxu0
    %v1393 = vpop.f32.mrb[0].mxu0
    %v1394 = vadd.f32 %v1307, %v1393
    %v1395 = vpop.f32.mrb[0].mxu0
    %1396 = vmatprep.mubr.bf16.mxu0 0
    %1397 = vmatmul.mubr.bf16.gmra.mrb[0].mxu0 %v1289
    %v1398 = vpop.f32.mrb[0].mxu0
    %v1399 = vadd.f32 %v1307, %v1398
    %v1400 = vpop.f32.mrb[0].mxu0
    %v1401 = vpop.f32.mrb[0].mxu0
    %v1402 = vadd.f32 %v1307, %v1401
    %v1403 = vpop.f32.mrb[0].mxu0
    %1404 = vmatprep.mubr.bf16.mxu0 0
    %1405 = vmatmul.mubr.bf16.gmra.mrb[0].mxu0 %v1290
    %v1406 = vpop.f32.mrb[0].mxu0
    %v1407 = vadd.f32 %v1307, %v1406
    %v1408 = vpop.f32.mrb[0].mxu0
    %v1409 = vpop.f32.mrb[0].mxu0
    %v1410 = vadd.f32 %v1307, %v1409
    %v1411 = vpop.f32.mrb[0].mxu0
    %1412 = vmatprep.mubr.bf16.mxu0 0
    %1413 = vmatmul.mubr.bf16.gmra.mrb[0].mxu0 %v1291
    %v1414 = vpop.f32.mrb[0].mxu0
    %v1415 = vadd.f32 %v1307, %v1414
    %v1416 = vpop.f32.mrb[0].mxu0
    %v1417 = vpop.f32.mrb[0].mxu0
    %v1418 = vadd.f32 %v1307, %v1417
    %v1419 = vpop.f32.mrb[0].mxu0
    %1420 = vmatprep.mubr.bf16.mxu0 0
    %1421 = vmatmul.mubr.bf16.gmra.mrb[0].mxu0 %v1292
    %v1422 = vpop.f32.mrb[0].mxu0
    %v1423 = vadd.f32 %v1307, %v1422
    %v1424 = vpop.f32.mrb[0].mxu0
    %v1425 = vpop.f32.mrb[0].mxu0
    %v1426 = vadd.f32 %v1307, %v1425
    %v1427 = vpop.f32.mrb[0].mxu0
    %1428 = vmatprep.mubr.bf16.mxu0 0
    %1429 = vmatmul.mubr.bf16.gmra.mrb[0].mxu0 %v1293
    %v1430 = vpop.f32.mrb[0].mxu0
    %v1431 = vadd.f32 %v1307, %v1430
    %v1432 = vpop.f32.mrb[0].mxu0
    %v1433 = vpop.f32.mrb[0].mxu0
    %v1434 = vadd.f32 %v1307, %v1433
    %v1435 = vpop.f32.mrb[0].mxu0
    %1436 = vmatprep.mubr.bf16.mxu0 0
    %1437 = vmatmul.mubr.bf16.gmra.mrb[0].mxu0 %v1294
    %v1438 = vpop.f32.mrb[0].mxu0
    %v1439 = vadd.f32 %v1307, %v1438
    %v1440 = vpop.f32.mrb[0].mxu0
    %v1441 = vpop.f32.mrb[0].mxu0
    %v1442 = vadd.f32 %v1307, %v1441
    %v1443 = vpop.f32.mrb[0].mxu0
    %1444 = vmatprep.mubr.bf16.mxu0 0
    %1445 = vmatmul.mubr.bf16.gmra.mrb[0].mxu0 %v1295
    %v1446 = vpop.f32.mrb[0].mxu0
    %v1447 = vadd.f32 %v1307, %v1446
    %v1448 = vpop.f32.mrb[0].mxu0
    %v1449 = vpop.f32.mrb[0].mxu0
    %v1450 = vadd.f32 %v1307, %v1449
    %v1451 = vpop.f32.mrb[0].mxu0
    %1452 = vmatprep.mubr.bf16.mxu0 0
    %1453 = vmatmul.mubr.bf16.gmra.mrb[0].mxu0 %v1296
    %v1454 = vpop.f32.mrb[0].mxu0
    %v1455 = vadd.f32 %v1307, %v1454
    %v1456 = vpop.f32.mrb[0].mxu0
    %v1457 = vpop.f32.mrb[0].mxu0
    %v1458 = vadd.f32 %v1307, %v1457
    %v1459 = vpop.f32.mrb[0].mxu0
    %1460 = vmatprep.mubr.bf16.mxu0 0
    %1461 = vmatmul.mubr.bf16.gmra.mrb[0].mxu0 %v1297
    %v1462 = vpop.f32.mrb[0].mxu0
    %v1463 = vadd.f32 %v1307, %v1462
    %v1464 = vpop.f32.mrb[0].mxu0
    %v1465 = vpop.f32.mrb[0].mxu0
    %v1466 = vadd.f32 %v1307, %v1465
    %v1467 = vpop.f32.mrb[0].mxu0
    %1468 = vmatprep.mubr.bf16.mxu0 0
    %1469 = vmatmul.mubr.bf16.gmra.mrb[0].mxu0 %v1298
    %v1470 = vpop.f32.mrb[0].mxu0
    %v1471 = vadd.f32 %v1307, %v1470
    %v1472 = vpop.f32.mrb[0].mxu0
    %v1473 = vpop.f32.mrb[0].mxu0
    %v1474 = vadd.f32 %v1307, %v1473
    %v1475 = vpop.f32.mrb[0].mxu0
    %1476 = vmatprep.mubr.bf16.mxu0 0
    %1477 = vmatmul.mubr.bf16.gmra.mrb[0].mxu0 %v1299
    %v1478 = vpop.f32.mrb[0].mxu0
    %v1479 = vadd.f32 %v1307, %v1478
    %v1480 = vpop.f32.mrb[0].mxu0
    %v1481 = vpop.f32.mrb[0].mxu0
    %v1482 = vadd.f32 %v1307, %v1481
    %v1483 = vpop.f32.mrb[0].mxu0
    %1484 = vmatprep.mubr.bf16.mxu0 0
    %1485 = vmatmul.mubr.bf16.gmra.mrb[0].mxu0 %v1300
    %v1486 = vpop.f32.mrb[0].mxu0
    %v1487 = vadd.f32 %v1307, %v1486
    %v1488 = vpop.f32.mrb[0].mxu0
    %v1489 = vpop.f32.mrb[0].mxu0
    %v1490 = vadd.f32 %v1307, %v1489
    %v1491 = vpop.f32.mrb[0].mxu0
    %1492 = vmatprep.mubr.bf16.mxu0 0
    %1493 = vmatmul.mubr.bf16.gmra.mrb[0].mxu0 %v1301
    %v1494 = vpop.f32.mrb[0].mxu0
    %v1495 = vadd.f32 %v1307, %v1494
    %v1496 = vpop.f32.mrb[0].mxu0
    %v1497 = vpop.f32.mrb[0].mxu0
    %v1498 = vadd.f32 %v1307, %v1497
    %v1499 = vpop.f32.mrb[0].mxu0
    %1500 = vmatprep.mubr.bf16.mxu0 0
    %1501 = vmatmul.mubr.bf16.gmra.mrb[0].mxu0 %v1302
    %v1502 = vpop.f32.mrb[0].mxu0
    %v1503 = vadd.f32 %v1307, %v1502
    %v1504 = vpop.f32.mrb[0].mxu0
    %v1505 = vpop.f32.mrb[0].mxu0
    %v1506 = vadd.f32 %v1307, %v1505
    %v1507 = vpop.f32.mrb[0].mxu0
    %1508 = vmatprep.mubr.bf16.mxu0 0
    %1509 = vmatmul.mubr.bf16.gmra.mrb[0].mxu0 %v1303
    %v1510 = vpop.f32.mrb[0].mxu0
    %v1511 = vadd.f32 %v1307, %v1510
    %v1512 = vpop.f32.mrb[0].mxu0
    %v1513 = vpop.f32.mrb[0].mxu0
    %v1514 = vadd.f32 %v1307, %v1513
    %v1515 = vpop.f32.mrb[0].mxu0
    %1516 = vdwg.mxu0
    %v1517 = vlaneseq
    %v1518 = vand.u32 %v1517, 127
    %vm1519 = vcmp.lt.s32.totalorder %v1518, 2
    %v1520 = vsel %vm1519, %v1391, -inf
    %v1521 = vsel %vm1519, %v1394, -inf
    %v1522 = vsel %vm1519, %v1399, -inf
    %v1523 = vsel %vm1519, %v1402, -inf
    %v1524 = vsel %vm1519, %v1407, -inf
    %v1525 = vsel %vm1519, %v1410, -inf
    %v1526 = vsel %vm1519, %v1415, -inf
    %v1527 = vsel %vm1519, %v1418, -inf
    %v1528 = vsel %vm1519, %v1423, -inf
    %v1529 = vsel %vm1519, %v1426, -inf
    %v1530 = vsel %vm1519, %v1431, -inf
    %v1531 = vsel %vm1519, %v1434, -inf
    %v1532 = vsel %vm1519, %v1439, -inf
    %v1533 = vsel %vm1519, %v1442, -inf
    %v1534 = vsel %vm1519, %v1447, -inf
    %v1535 = vsel %vm1519, %v1450, -inf
    %v1536 = vsel %vm1519, %v1455, -inf
    %v1537 = vsel %vm1519, %v1458, -inf
    %v1538 = vsel %vm1519, %v1463, -inf
    %v1539 = vsel %vm1519, %v1466, -inf
    %v1540 = vsel %vm1519, %v1471, -inf
    %v1541 = vsel %vm1519, %v1474, -inf
    %v1542 = vsel %vm1519, %v1479, -inf
    %v1543 = vsel %vm1519, %v1482, -inf
    %v1544 = vsel %vm1519, %v1487, -inf
    %v1545 = vsel %vm1519, %v1490, -inf
    %v1546 = vsel %vm1519, %v1495, -inf
    %v1547 = vsel %vm1519, %v1498, -inf
    %v1548 = vsel %vm1519, %v1503, -inf
    %v1549 = vsel %vm1519, %v1506, -inf
    %v1550 = vsel %vm1519, %v1511, -inf
    %v1551 = vsel %vm1519, %v1514, -inf
    %1552 = vmax.xlane.f32.xlu0 %v1520
    %v1553 = vpop.xlane.xlu0 %1552
    %1554 = vmax.xlane.f32.xlu0 %v1521
    %v1555 = vpop.xlane.xlu0 %1554
    %1556 = vmax.xlane.f32.xlu0 %v1522
    %v1557 = vpop.xlane.xlu0 %1556
    %1558 = vmax.xlane.f32.xlu0 %v1523
    %v1559 = vpop.xlane.xlu0 %1558
    %1560 = vmax.xlane.f32.xlu0 %v1524
    %v1561 = vpop.xlane.xlu0 %1560
    %1562 = vmax.xlane.f32.xlu0 %v1525
    %v1563 = vpop.xlane.xlu0 %1562
    %1564 = vmax.xlane.f32.xlu0 %v1526
    %v1565 = vpop.xlane.xlu0 %1564
    %1566 = vmax.xlane.f32.xlu0 %v1527
    %v1567 = vpop.xlane.xlu0 %1566
    %1568 = vmax.xlane.f32.xlu0 %v1528
    %v1569 = vpop.xlane.xlu0 %1568
    %1570 = vmax.xlane.f32.xlu0 %v1529
    %v1571 = vpop.xlane.xlu0 %1570
    %1572 = vmax.xlane.f32.xlu0 %v1530
    %v1573 = vpop.xlane.xlu0 %1572
    %1574 = vmax.xlane.f32.xlu0 %v1531
    %v1575 = vpop.xlane.xlu0 %1574
    %1576 = vmax.xlane.f32.xlu0 %v1532
    %v1577 = vpop.xlane.xlu0 %1576
    %1578 = vmax.xlane.f32.xlu0 %v1533
    %v1579 = vpop.xlane.xlu0 %1578
    %1580 = vmax.xlane.f32.xlu0 %v1534
    %v1581 = vpop.xlane.xlu0 %1580
    %1582 = vmax.xlane.f32.xlu0 %v1535
    %v1583 = vpop.xlane.xlu0 %1582
    %1584 = vmax.xlane.f32.xlu0 %v1536
    %v1585 = vpop.xlane.xlu0 %1584
    %1586 = vmax.xlane.f32.xlu0 %v1537
    %v1587 = vpop.xlane.xlu0 %1586
    %1588 = vmax.xlane.f32.xlu0 %v1538
    %v1589 = vpop.xlane.xlu0 %1588
    %1590 = vmax.xlane.f32.xlu0 %v1539
    %v1591 = vpop.xlane.xlu0 %1590
    %1592 = vmax.xlane.f32.xlu0 %v1540
    %v1593 = vpop.xlane.xlu0 %1592
    %1594 = vmax.xlane.f32.xlu0 %v1541
    %v1595 = vpop.xlane.xlu0 %1594
    %1596 = vmax.xlane.f32.xlu0 %v1542
    %v1597 = vpop.xlane.xlu0 %1596
    %1598 = vmax.xlane.f32.xlu0 %v1543
    %v1599 = vpop.xlane.xlu0 %1598
    %1600 = vmax.xlane.f32.xlu0 %v1544
    %v1601 = vpop.xlane.xlu0 %1600
    %1602 = vmax.xlane.f32.xlu0 %v1545
    %v1603 = vpop.xlane.xlu0 %1602
    %1604 = vmax.xlane.f32.xlu0 %v1546
    %v1605 = vpop.xlane.xlu0 %1604
    %1606 = vmax.xlane.f32.xlu0 %v1547
    %v1607 = vpop.xlane.xlu0 %1606
    %1608 = vmax.xlane.f32.xlu0 %v1548
    %v1609 = vpop.xlane.xlu0 %1608
    %1610 = vmax.xlane.f32.xlu0 %v1549
    %v1611 = vpop.xlane.xlu0 %1610
    %1612 = vmax.xlane.f32.xlu0 %v1550
    %v1613 = vpop.xlane.xlu0 %1612
    %1614 = vmax.xlane.f32.xlu0 %v1551
    %v1615 = vpop.xlane.xlu0 %1614
    %v1616 = vsub.f32 %v1520, %v1553
    %v1617 = vsub.f32 %v1521, %v1555
    %v1618 = vsub.f32 %v1522, %v1557
    %v1619 = vsub.f32 %v1523, %v1559
    %v1620 = vsub.f32 %v1524, %v1561
    %v1621 = vsub.f32 %v1525, %v1563
    %v1622 = vsub.f32 %v1526, %v1565
    %v1623 = vsub.f32 %v1527, %v1567
    %v1624 = vsub.f32 %v1528, %v1569
    %v1625 = vsub.f32 %v1529, %v1571
    %v1626 = vsub.f32 %v1530, %v1573
    %v1627 = vsub.f32 %v1531, %v1575
    %v1628 = vsub.f32 %v1532, %v1577
    %v1629 = vsub.f32 %v1533, %v1579
    %v1630 = vsub.f32 %v1534, %v1581
    %v1631 = vsub.f32 %v1535, %v1583
    %v1632 = vsub.f32 %v1536, %v1585
    %v1633 = vsub.f32 %v1537, %v1587
    %v1634 = vsub.f32 %v1538, %v1589
    %v1635 = vsub.f32 %v1539, %v1591
    %v1636 = vsub.f32 %v1540, %v1593
    %v1637 = vsub.f32 %v1541, %v1595
    %v1638 = vsub.f32 %v1542, %v1597
    %v1639 = vsub.f32 %v1543, %v1599
    %v1640 = vsub.f32 %v1544, %v1601
    %v1641 = vsub.f32 %v1545, %v1603
    %v1642 = vsub.f32 %v1546, %v1605
    %v1643 = vsub.f32 %v1547, %v1607
    %v1644 = vsub.f32 %v1548, %v1609
    %v1645 = vsub.f32 %v1549, %v1611
    %v1646 = vsub.f32 %v1550, %v1613
    %v1647 = vsub.f32 %v1551, %v1615
    %v1648 = vmul.f32 %v1616, 1.442695
    %v1649 = vpow.pop %v1648
    %v1650 = vmul.f32 %v1617, 1.442695
    %v1651 = vpow.pop %v1650
    %v1652 = vmul.f32 %v1618, 1.442695
    %v1653 = vpow.pop %v1652
    %v1654 = vmul.f32 %v1619, 1.442695
    %v1655 = vpow.pop %v1654
    %v1656 = vmul.f32 %v1620, 1.442695
    %v1657 = vpow.pop %v1656
    %v1658 = vmul.f32 %v1621, 1.442695
    %v1659 = vpow.pop %v1658
    %v1660 = vmul.f32 %v1622, 1.442695
    %v1661 = vpow.pop %v1660
    %v1662 = vmul.f32 %v1623, 1.442695
    %v1663 = vpow.pop %v1662
    %v1664 = vmul.f32 %v1624, 1.442695
    %v1665 = vpow.pop %v1664
    %v1666 = vmul.f32 %v1625, 1.442695
    %v1667 = vpow.pop %v1666
    %v1668 = vmul.f32 %v1626, 1.442695
    %v1669 = vpow.pop %v1668
    %v1670 = vmul.f32 %v1627, 1.442695
    %v1671 = vpow.pop %v1670
    %v1672 = vmul.f32 %v1628, 1.442695
    %v1673 = vpow.pop %v1672
    %v1674 = vmul.f32 %v1629, 1.442695
    %v1675 = vpow.pop %v1674
    %v1676 = vmul.f32 %v1630, 1.442695
    %v1677 = vpow.pop %v1676
    %v1678 = vmul.f32 %v1631, 1.442695
    %v1679 = vpow.pop %v1678
    %v1680 = vmul.f32 %v1632, 1.442695
    %v1681 = vpow.pop %v1680
    %v1682 = vmul.f32 %v1633, 1.442695
    %v1683 = vpow.pop %v1682
    %v1684 = vmul.f32 %v1634, 1.442695
    %v1685 = vpow.pop %v1684
    %v1686 = vmul.f32 %v1635, 1.442695
    %v1687 = vpow.pop %v1686
    %v1688 = vmul.f32 %v1636, 1.442695
    %v1689 = vpow.pop %v1688
    %v1690 = vmul.f32 %v1637, 1.442695
    %v1691 = vpow.pop %v1690
    %v1692 = vmul.f32 %v1638, 1.442695
    %v1693 = vpow.pop %v1692
    %v1694 = vmul.f32 %v1639, 1.442695
    %v1695 = vpow.pop %v1694
    %v1696 = vmul.f32 %v1640, 1.442695
    %v1697 = vpow.pop %v1696
    %v1698 = vmul.f32 %v1641, 1.442695
    %v1699 = vpow.pop %v1698
    %v1700 = vmul.f32 %v1642, 1.442695
    %v1701 = vpow.pop %v1700
    %v1702 = vmul.f32 %v1643, 1.442695
    %v1703 = vpow.pop %v1702
    %v1704 = vmul.f32 %v1644, 1.442695
    %v1705 = vpow.pop %v1704
    %v1706 = vmul.f32 %v1645, 1.442695
    %v1707 = vpow.pop %v1706
    %v1708 = vmul.f32 %v1646, 1.442695
    %v1709 = vpow.pop %v1708
    %v1710 = vmul.f32 %v1647, 1.442695
    %v1711 = vpow.pop %v1710
    %1712 = vadd.xlane.f32.xlu0 %v1649
    %v1713 = vpop.xlane.xlu0 %1712
    %1714 = vadd.xlane.f32.xlu0 %v1651
    %v1715 = vpop.xlane.xlu0 %1714
    %1716 = vadd.xlane.f32.xlu0 %v1653
    %v1717 = vpop.xlane.xlu0 %1716
    %1718 = vadd.xlane.f32.xlu0 %v1655
    %v1719 = vpop.xlane.xlu0 %1718
    %1720 = vadd.xlane.f32.xlu0 %v1657
    %v1721 = vpop.xlane.xlu0 %1720
    %1722 = vadd.xlane.f32.xlu0 %v1659
    %v1723 = vpop.xlane.xlu0 %1722
    %1724 = vadd.xlane.f32.xlu0 %v1661
    %v1725 = vpop.xlane.xlu0 %1724
    %1726 = vadd.xlane.f32.xlu0 %v1663
    %v1727 = vpop.xlane.xlu0 %1726
    %1728 = vadd.xlane.f32.xlu0 %v1665
    %v1729 = vpop.xlane.xlu0 %1728
    %1730 = vadd.xlane.f32.xlu0 %v1667
    %v1731 = vpop.xlane.xlu0 %1730
    %1732 = vadd.xlane.f32.xlu0 %v1669
    %v1733 = vpop.xlane.xlu0 %1732
    %1734 = vadd.xlane.f32.xlu0 %v1671
    %v1735 = vpop.xlane.xlu0 %1734
    %1736 = vadd.xlane.f32.xlu0 %v1673
    %v1737 = vpop.xlane.xlu0 %1736
    %1738 = vadd.xlane.f32.xlu0 %v1675
    %v1739 = vpop.xlane.xlu0 %1738
    %1740 = vadd.xlane.f32.xlu0 %v1677
    %v1741 = vpop.xlane.xlu0 %1740
    %1742 = vadd.xlane.f32.xlu0 %v1679
    %v1743 = vpop.xlane.xlu0 %1742
    %1744 = vadd.xlane.f32.xlu0 %v1681
    %v1745 = vpop.xlane.xlu0 %1744
    %1746 = vadd.xlane.f32.xlu0 %v1683
    %v1747 = vpop.xlane.xlu0 %1746
    %1748 = vadd.xlane.f32.xlu0 %v1685
    %v1749 = vpop.xlane.xlu0 %1748
    %1750 = vadd.xlane.f32.xlu0 %v1687
    %v1751 = vpop.xlane.xlu0 %1750
    %1752 = vadd.xlane.f32.xlu0 %v1689
    %v1753 = vpop.xlane.xlu0 %1752
    %1754 = vadd.xlane.f32.xlu0 %v1691
    %v1755 = vpop.xlane.xlu0 %1754
    %1756 = vadd.xlane.f32.xlu0 %v1693
    %v1757 = vpop.xlane.xlu0 %1756
    %1758 = vadd.xlane.f32.xlu0 %v1695
    %v1759 = vpop.xlane.xlu0 %1758
    %1760 = vadd.xlane.f32.xlu0 %v1697
    %v1761 = vpop.xlane.xlu0 %1760
    %1762 = vadd.xlane.f32.xlu0 %v1699
    %v1763 = vpop.xlane.xlu0 %1762
    %1764 = vadd.xlane.f32.xlu0 %v1701
    %v1765 = vpop.xlane.xlu0 %1764
    %1766 = vadd.xlane.f32.xlu0 %v1703
    %v1767 = vpop.xlane.xlu0 %1766
    %1768 = vadd.xlane.f32.xlu0 %v1705
    %v1769 = vpop.xlane.xlu0 %1768
    %1770 = vadd.xlane.f32.xlu0 %v1707
    %v1771 = vpop.xlane.xlu0 %1770
    %1772 = vadd.xlane.f32.xlu0 %v1709
    %v1773 = vpop.xlane.xlu0 %1772
    %1774 = vadd.xlane.f32.xlu0 %v1711
    %v1775 = vpop.xlane.xlu0 %1774
    %v1776 = vlog2.pop %v1713
    %v1777 = vmul.f32 %v1776, 0.6931472
    %v1778 = vlog2.pop %v1715
    %v1779 = vmul.f32 %v1778, 0.6931472
    %v1780 = vlog2.pop %v1717
    %v1781 = vmul.f32 %v1780, 0.6931472
    %v1782 = vlog2.pop %v1719
    %v1783 = vmul.f32 %v1782, 0.6931472
    %v1784 = vlog2.pop %v1721
    %v1785 = vmul.f32 %v1784, 0.6931472
    %v1786 = vlog2.pop %v1723
    %v1787 = vmul.f32 %v1786, 0.6931472
    %v1788 = vlog2.pop %v1725
    %v1789 = vmul.f32 %v1788, 0.6931472
    %v1790 = vlog2.pop %v1727
    %v1791 = vmul.f32 %v1790, 0.6931472
    %v1792 = vlog2.pop %v1729
    %v1793 = vmul.f32 %v1792, 0.6931472
    %v1794 = vlog2.pop %v1731
    %v1795 = vmul.f32 %v1794, 0.6931472
    %v1796 = vlog2.pop %v1733
    %v1797 = vmul.f32 %v1796, 0.6931472
    %v1798 = vlog2.pop %v1735
    %v1799 = vmul.f32 %v1798, 0.6931472
    %v1800 = vlog2.pop %v1737
    %v1801 = vmul.f32 %v1800, 0.6931472
    %v1802 = vlog2.pop %v1739
    %v1803 = vmul.f32 %v1802, 0.6931472
    %v1804 = vlog2.pop %v1741
    %v1805 = vmul.f32 %v1804, 0.6931472
    %v1806 = vlog2.pop %v1743
    %v1807 = vmul.f32 %v1806, 0.6931472
    %v1808 = vlog2.pop %v1745
    %v1809 = vmul.f32 %v1808, 0.6931472
    %v1810 = vlog2.pop %v1747
    %v1811 = vmul.f32 %v1810, 0.6931472
    %v1812 = vlog2.pop %v1749
    %v1813 = vmul.f32 %v1812, 0.6931472
    %v1814 = vlog2.pop %v1751
    %v1815 = vmul.f32 %v1814, 0.6931472
    %v1816 = vlog2.pop %v1753
    %v1817 = vmul.f32 %v1816, 0.6931472
    %v1818 = vlog2.pop %v1755
    %v1819 = vmul.f32 %v1818, 0.6931472
    %v1820 = vlog2.pop %v1757
    %v1821 = vmul.f32 %v1820, 0.6931472
    %v1822 = vlog2.pop %v1759
    %v1823 = vmul.f32 %v1822, 0.6931472
    %v1824 = vlog2.pop %v1761
    %v1825 = vmul.f32 %v1824, 0.6931472
    %v1826 = vlog2.pop %v1763
    %v1827 = vmul.f32 %v1826, 0.6931472
    %v1828 = vlog2.pop %v1765
    %v1829 = vmul.f32 %v1828, 0.6931472
    %v1830 = vlog2.pop %v1767
    %v1831 = vmul.f32 %v1830, 0.6931472
    %v1832 = vlog2.pop %v1769
    %v1833 = vmul.f32 %v1832, 0.6931472
    %v1834 = vlog2.pop %v1771
    %v1835 = vmul.f32 %v1834, 0.6931472
    %v1836 = vlog2.pop %v1773
    %v1837 = vmul.f32 %v1836, 0.6931472
    %v1838 = vlog2.pop %v1775
    %v1839 = vmul.f32 %v1838, 0.6931472
    %v1840 = vsub.f32 %v1616, %v1777
    %v1841 = vsub.f32 %v1617, %v1779
    %v1842 = vsub.f32 %v1618, %v1781
    %v1843 = vsub.f32 %v1619, %v1783
    %v1844 = vsub.f32 %v1620, %v1785
    %v1845 = vsub.f32 %v1621, %v1787
    %v1846 = vsub.f32 %v1622, %v1789
    %v1847 = vsub.f32 %v1623, %v1791
    %v1848 = vsub.f32 %v1624, %v1793
    %v1849 = vsub.f32 %v1625, %v1795
    %v1850 = vsub.f32 %v1626, %v1797
    %v1851 = vsub.f32 %v1627, %v1799
    %v1852 = vsub.f32 %v1628, %v1801
    %v1853 = vsub.f32 %v1629, %v1803
    %v1854 = vsub.f32 %v1630, %v1805
    %v1855 = vsub.f32 %v1631, %v1807
    %v1856 = vsub.f32 %v1632, %v1809
    %v1857 = vsub.f32 %v1633, %v1811
    %v1858 = vsub.f32 %v1634, %v1813
    %v1859 = vsub.f32 %v1635, %v1815
    %v1860 = vsub.f32 %v1636, %v1817
    %v1861 = vsub.f32 %v1637, %v1819
    %v1862 = vsub.f32 %v1638, %v1821
    %v1863 = vsub.f32 %v1639, %v1823
    %v1864 = vsub.f32 %v1640, %v1825
    %v1865 = vsub.f32 %v1641, %v1827
    %v1866 = vsub.f32 %v1642, %v1829
    %v1867 = vsub.f32 %v1643, %v1831
    %v1868 = vsub.f32 %v1644, %v1833
    %v1869 = vsub.f32 %v1645, %v1835
    %v1870 = vsub.f32 %v1646, %v1837
    %v1871 = vsub.f32 %v1647, %v1839
    %1872 = vst [vmem:[#allocation6] sm:$0xff] %v1840
    %1873 = vst [vmem:[#allocation6 + $0x8] sm:$0xff] %v1841
    %1874 = vst [vmem:[#allocation6 + $0x10] sm:$0xff] %v1842
    %1875 = vst [vmem:[#allocation6 + $0x18] sm:$0xff] %v1843
    %1876 = vst [vmem:[#allocation6 + $0x20] sm:$0xff] %v1844
    %1877 = vst [vmem:[#allocation6 + $0x28] sm:$0xff] %v1845
    %1878 = vst [vmem:[#allocation6 + $0x30] sm:$0xff] %v1846
    %1879 = vst [vmem:[#allocation6 + $0x38] sm:$0xff] %v1847
    %1880 = vst [vmem:[#allocation6 + $0x40] sm:$0xff] %v1848
    %1881 = vst [vmem:[#allocation6 + $0x48] sm:$0xff] %v1849
    %1882 = vst [vmem:[#allocation6 + $0x50] sm:$0xff] %v1850
    %1883 = vst [vmem:[#allocation6 + $0x58] sm:$0xff] %v1851
    %1884 = vst [vmem:[#allocation6 + $0x60] sm:$0xff] %v1852
    %1885 = vst [vmem:[#allocation6 + $0x68] sm:$0xff] %v1853
    %1886 = vst [vmem:[#allocation6 + $0x70] sm:$0xff] %v1854
    %1887 = vst [vmem:[#allocation6 + $0x78] sm:$0xff] %v1855
    %1888 = vst [vmem:[#allocation6 + $0x80] sm:$0xff] %v1856
    %1889 = vst [vmem:[#allocation6 + $0x88] sm:$0xff] %v1857
    %1890 = vst [vmem:[#allocation6 + $0x90] sm:$0xff] %v1858
    %1891 = vst [vmem:[#allocation6 + $0x98] sm:$0xff] %v1859
    %1892 = vst [vmem:[#allocation6 + $0xa0] sm:$0xff] %v1860
    %1893 = vst [vmem:[#allocation6 + $0xa8] sm:$0xff] %v1861
    %1894 = vst [vmem:[#allocation6 + $0xb0] sm:$0xff] %v1862
    %1895 = vst [vmem:[#allocation6 + $0xb8] sm:$0xff] %v1863
    %1896 = vst [vmem:[#allocation6 + $0xc0] sm:$0xff] %v1864
    %1897 = vst [vmem:[#allocation6 + $0xc8] sm:$0xff] %v1865
    %1898 = vst [vmem:[#allocation6 + $0xd0] sm:$0xff] %v1866
    %1899 = vst [vmem:[#allocation6 + $0xd8] sm:$0xff] %v1867
    %1900 = vst [vmem:[#allocation6 + $0xe0] sm:$0xff] %v1868
    %1901 = vst [vmem:[#allocation6 + $0xe8] sm:$0xff] %v1869
    %1902 = vst [vmem:[#allocation6 + $0xf0] sm:$0xff] %v1870
    %1903 = vst [vmem:[#allocation6 + $0xf8] sm:$0xff] %v1871
    // Predicated region
    $region18: #{tpu_custom_call.1} parent=1 // pred_check
      _
    $region19: #{tpu_custom_call.1} parent=1 // pred_check_branch
      %1905 = sbr.rel (0) target = $region21
    $region20: #{tpu_custom_call.1} parent=1 // pred_region
      %s1907 = ssub.s32 4096, 4096
      %1908 = vsyncadd [#allocation5], %s1907
      %s1909 = sshll.u32 [#allocation6], 4
      %s1910 = int_to_ptr.vmem [resolvable:$true] %s1909
      %1915 = dma.vmem_to_hbm [thread:$0]  %s1910, 4096, %s3, [#allocation5], 128, 128, 8
    $region21: #{tpu_custom_call.1} parent=1 // pred_fallthru
      _
    // Predicated region
    $region22: #{tpu_custom_call.1} parent=1 // pred_check
      _
    $region23: #{tpu_custom_call.1} parent=1 // pred_check_branch
      %1917 = sbr.rel (0) target = $region25
    $region24: #{tpu_custom_call.1} parent=1 // pred_region
      %1918 = dma.done [#allocation5], 4096
    $region25: #{tpu_custom_call.1} parent=1 // pred_fallthru
      _
    %1919 = vsyncpa [#allocation4], 1
    %1920 = vsyncpa [#allocation5], 1

</llo_original>
